<compile_context>
chip_gen: v7x
topology: tpu7x:2x2x1
jax: 0.10.0
libtpu: 0.0.40
codegen_flags: <defaults>
</compile_context>

<pallas_src>
import math

import jax
import jax.numpy as jnp
from jax import lax
from jax.experimental import pallas as pl
from jax.experimental.pallas import tpu as pltpu


def _leaky_relu(x, slope=0.01):
    return jnp.where(x > 0, x, slope * x)


def path_encoder_kernel(ids_ref, emb_ref, w_ref, b_ref, loss_ref, proj_ref):
    SB = ids_ref.shape[0]
    R, H = emb_ref.shape
    B = proj_ref.shape[0]
    S = SB // B

    # ---- static lane views into the packed slabs (one-time loads) ----------
    wih = w_ref[:, 0 * H:4 * H]            # [H, 4H]  bf16
    whh = w_ref[:, 4 * H:8 * H]            # [H, 4H]  bf16
    w1a = w_ref[:, 8 * H:9 * H]            # [H, H]   bf16
    w1b = w_ref[:, 9 * H:10 * H]
    w2 = w_ref[:, 10 * H:11 * H]
    wp1 = w_ref[:, 11 * H:12 * H]
    wp2 = w_ref[:, 12 * H:13 * H]

    bg = b_ref[:, 0:4 * H]                 # [1, 4H] f32
    b1 = b_ref[:, 4 * H:5 * H]
    b2 = b_ref[:, 5 * H:6 * H]
    bp1 = b_ref[:, 6 * H:7 * H]
    bp2 = b_ref[:, 7 * H:8 * H]

    # ---- in-kernel embedding gather fused with the input projection --------
    # onehot @ (rel_emb @ W_ih)  ==  gather(rel_emb, ids) @ W_ih
    ids = ids_ref[...]                                         # [S*B, 1] int32
    rel_iota = lax.broadcasted_iota(jnp.int32, (SB, R), 1)
    onehot = (ids == rel_iota).astype(jnp.bfloat16)            # [S*B, R]
    emb_wih = jnp.dot(emb_ref[...], wih,
                      preferred_element_type=jnp.float32)      # [R, 4H] f32
    x_proj = (jnp.dot(onehot, emb_wih.astype(jnp.bfloat16),
                      preferred_element_type=jnp.float32)
              + bg)                                            # [S*B, 4H] f32

    # ---- single-layer LSTM (PyTorch gate order i, f, g, o) ------------------
    # Only h @ W_hh and the cell update remain on the serial chain.
    h = jnp.zeros((B, H), jnp.float32)
    c = jnp.zeros((B, H), jnp.float32)
    hs = []
    for t in range(S):                                         # static -> unrolled
        gates = x_proj[t * B:(t + 1) * B, :] + jnp.dot(
            h.astype(jnp.bfloat16), whh, preferred_element_type=jnp.float32)
        sig_all = jax.nn.sigmoid(gates)     # full [B,4H] vreg: one EUP push
        tanh_all = jnp.tanh(gates)          # full [B,4H] vreg: one EUP push
        i = sig_all[:, 0 * H:1 * H]
        f = sig_all[:, 1 * H:2 * H]
        g = tanh_all[:, 2 * H:3 * H]
        o = sig_all[:, 3 * H:4 * H]
        c = f * c + i * g
        h = o * jnp.tanh(c)
        hs.append(h)

    # ---- body_recursive: fold sequence through the MLP ----------------------
    # Hoisted: lstm_out[t] @ w1b + b1 for t = 1..S-1 in one batched matmul.
    h_tail = jnp.concatenate(hs[1:], axis=0).astype(jnp.bfloat16)  # [(S-1)*B, H]
    bproj = jnp.dot(h_tail, w1b, preferred_element_type=jnp.float32) + b1

    b2_b = jnp.broadcast_to(b2, (B, H))                        # hoisted broadcast

    # TODO(synk): nn.Dropout(0.3) layers are identity here (deterministic eval).
    e = hs[0]
    for j in range(1, S):                                      # static -> unrolled
        z = jnp.dot(e.astype(jnp.bfloat16), w1a,
                    preferred_element_type=jnp.float32) \
            + bproj[(j - 1) * B:j * B, :]
        z = _leaky_relu(z)
        z = jnp.dot(z.astype(jnp.bfloat16), w2,
                    preferred_element_type=jnp.float32) + b2_b
        e = _leaky_relu(z)

    # ---- projection head + L2 normalize -------------------------------------
    p = jnp.dot(e.astype(jnp.bfloat16), wp1,
                preferred_element_type=jnp.float32) + bp1
    p = jnp.maximum(p, 0.0)
    p = jnp.dot(p.astype(jnp.bfloat16), wp2,
                preferred_element_type=jnp.float32) + bp2
    # F.normalize: reference clamps ||p|| at 1e-12; rsqrt(sum + 1e-12) is
    # equivalent for any non-degenerate vector.
    inv_norm = lax.rsqrt(jnp.sum(p * p, axis=-1, keepdims=True) + 1e-12)
    p = p * inv_norm
    proj_ref[...] = p

    # ---- contrastive loss (cal_loss, tao = 0.5), kept fully f32 -------------
    tao = 0.5
    # rows are unit-norm -> cosine similarity == dot product
    sim = lax.dot_general(p, p, (((1,), (1,)), ((), ())),
                          preferred_element_type=jnp.float32)      # [B, B]
    row = lax.broadcasted_iota(jnp.int32, (B, B), 0)
    col = lax.broadcasted_iota(jnp.int32, (B, B), 1)
    eye = (row == col).astype(jnp.float32)
    sim = (sim - eye) / tao
    m = jnp.max(sim, axis=-1, keepdims=True)
    lse = m + jnp.log(jnp.sum(jnp.exp(sim - m), axis=-1, keepdims=True))
    logp = sim - lse
    target = row + 1 - 2 * (row % 2)         # y_true[i] = i + 1 - (i % 2) * 2 (B even)
    mask = (col == target).astype(jnp.float32)
    per_row = jnp.sum(mask * logp, axis=-1, keepdims=True)          # [B, 1]
    loss_ref[...] = -jnp.sum(per_row, axis=0, keepdims=True) / B


def init_params(key, hidden_size, rel_num):
    H = hidden_size
    k = jax.random.split(key, 12)

    def u(kk, shape, bound):
        return jax.random.uniform(kk, shape, jnp.float32, -bound, bound)

    s = 1.0 / math.sqrt(H)
    s2 = 1.0 / math.sqrt(2 * H)
    return dict(
        rel_emb=jax.random.normal(k[0], (rel_num, H), jnp.float32),
        wih=u(k[1], (H, 4 * H), s),
        whh=u(k[2], (H, 4 * H), s),
        bg=u(k[3], (1, 4 * H), s),
        w1=u(k[4], (2 * H, H), s2),
        b1=u(k[5], (1, H), s2),
        w2=u(k[6], (H, H), s),
        b2=u(k[7], (1, H), s),
        wp1=u(k[8], (H, H), s),
        bp1=u(k[9], (1, H), s),
        wp2=u(k[10], (H, H), s),
        bp2=u(k[11], (1, H), s),
    )


@jax.jit
def path_encoder_forward(x, params):
    B, S = x.shape
    H = params["rel_emb"].shape[1]

    # Relation ids, time-major flattened [S*B, 1] so the kernel's one-hot
    # gather lines up with the x_proj[t*B:(t+1)*B] slicing.
    ids = x.T.reshape(S * B, 1).astype(jnp.int32)

    # Split w1 at trace time (free) instead of slicing a 2H-row VMEM ref.
    w1a = params["w1"][:H, :]
    w1b = params["w1"][H:, :]

    # Pack 7 weight matrices into one lane-dense bf16 slab and 5 biases into
    # one f32 vector -> 4 input DMAs total instead of 13.
    w_slab = jnp.concatenate(
        [params["wih"], params["whh"], w1a, w1b,
         params["w2"], params["wp1"], params["wp2"]],
        axis=1).astype(jnp.bfloat16)                           # [H, 13H]
    b_slab = jnp.concatenate(
        [params["bg"], params["b1"], params["b2"],
         params["bp1"], params["bp2"]], axis=1)                # [1, 8H] f32
    emb_tbl = params["rel_emb"].astype(jnp.bfloat16)           # [R, H]

    vmem = pl.BlockSpec(memory_space=pltpu.MemorySpace.VMEM)
    # TODO(synk): if >1 independent path batch is encoded per step (esp. on
    # v7x's 2 TCs), add a leading "parallel" grid axis over batches.
    loss, proj = pl.pallas_call(
        path_encoder_kernel,
        out_shape=(jax.ShapeDtypeStruct((1, 1), jnp.float32),
                   jax.ShapeDtypeStruct((B, H), jnp.float32)),
        in_specs=[vmem] * 4,
        out_specs=(vmem, vmem),
    )(ids, emb_tbl, w_slab, b_slab)
    return loss[0, 0], proj


def reference_forward(x, params):
    """Pure-JAX f32 reference mirroring the PyTorch module (dropout = identity)."""
    H = params["rel_emb"].shape[1]
    emb = params["rel_emb"][x]                                  # [B, S, H]
    B, S, _ = emb.shape
    h = jnp.zeros((B, H), jnp.float32)
    c = jnp.zeros((B, H), jnp.float32)
    outs = []
    for t in range(S):
        gates = emb[:, t, :] @ params["wih"] + h @ params["whh"] + params["bg"]
        i = jax.nn.sigmoid(gates[:, :H])
        f = jax.nn.sigmoid(gates[:, H:2 * H])
        g = jnp.tanh(gates[:, 2 * H:3 * H])
        o = jax.nn.sigmoid(gates[:, 3 * H:])
        c = f * c + i * g
        h = o * jnp.tanh(c)
        outs.append(h)
    out = jnp.stack(outs, axis=1)

    def mlp(z):
        z = z @ params["w1"] + params["b1"]
        z = jnp.where(z > 0, z, 0.01 * z)
        z = z @ params["w2"] + params["b2"]
        z = jnp.where(z > 0, z, 0.01 * z)
        return z

    e = out[:, 0, :]
    for j in range(1, S):
        e = mlp(jnp.concatenate([e, out[:, j, :]], axis=1))

    p = jnp.maximum(e @ params["wp1"] + params["bp1"], 0.0)
    p = p @ params["wp2"] + params["bp2"]
    p = p / jnp.maximum(jnp.linalg.norm(p, axis=-1, keepdims=True), 1e-12)

    sim = (p @ p.T - jnp.eye(B)) / 0.5
    y = jnp.arange(B) + 1 - (jnp.arange(B) % 2) * 2
    logp = jax.nn.log_softmax(sim, axis=-1)
    loss = -jnp.mean(logp[jnp.arange(B), y])
    return loss, p


if __name__ == "__main__":
    key = jax.random.PRNGKey(0)
    B, S, H, REL_NUM = 8, 8, 32, 16    # batch (even, for contrastive pairs), seq, hidden
    pkey, xkey = jax.random.split(key)
    params = init_params(pkey, H, REL_NUM)
    x = jax.random.randint(xkey, (B, S), 0, REL_NUM, dtype=jnp.int32)

    loss, proj = path_encoder_forward(x, params)
    jax.block_until_ready((loss, proj))

    loss_ref, proj_ref = reference_forward(x, params)
    assert jnp.isfinite(loss)
    assert jnp.allclose(loss, loss_ref, atol=5e-2, rtol=5e-2), (loss, loss_ref)
    assert jnp.allclose(proj, proj_ref, atol=5e-2, rtol=5e-2)
    print("KERNEL_OK")
</pallas_src>

<mosaic_0001>
module attributes {stable_mosaic.version = 11 : i64} {
  func.func @path_encoder_kernel(%arg0: memref<64x1xi32, #tpu.memory_space<vmem>>, %arg1: memref<16x32xbf16, #tpu.memory_space<vmem>>, %arg2: memref<32x416xbf16, #tpu.memory_space<vmem>>, %arg3: memref<1x256xf32, #tpu.memory_space<vmem>>, %arg4: memref<1x1xf32, #tpu.memory_space<vmem>>, %arg5: memref<8x32xf32, #tpu.memory_space<vmem>>) attributes {dimension_semantics = [], scalar_prefetch = 0 : i64, scratch_operands = 0 : i64, tpu.core_type = #tpu.core_type<tc>} {
    %c0 = arith.constant 0 : index
    %c0_0 = arith.constant 0 : index
    %0 = vector.load %arg2[%c0, %c0_0] : memref<32x416xbf16, #tpu.memory_space<vmem>>, vector<32x128xbf16>
    %c0_1 = arith.constant 0 : index
    %c128 = arith.constant 128 : index
    %1 = vector.load %arg2[%c0_1, %c128] : memref<32x416xbf16, #tpu.memory_space<vmem>>, vector<32x128xbf16>
    %c0_2 = arith.constant 0 : index
    %c256 = arith.constant 256 : index
    %2 = vector.load %arg2[%c0_2, %c256] : memref<32x416xbf16, #tpu.memory_space<vmem>>, vector<32x32xbf16>
    %c0_3 = arith.constant 0 : index
    %c288 = arith.constant 288 : index
    %3 = vector.load %arg2[%c0_3, %c288] : memref<32x416xbf16, #tpu.memory_space<vmem>>, vector<32x32xbf16>
    %c0_4 = arith.constant 0 : index
    %c320 = arith.constant 320 : index
    %4 = vector.load %arg2[%c0_4, %c320] : memref<32x416xbf16, #tpu.memory_space<vmem>>, vector<32x32xbf16>
    %c0_5 = arith.constant 0 : index
    %c352 = arith.constant 352 : index
    %5 = vector.load %arg2[%c0_5, %c352] : memref<32x416xbf16, #tpu.memory_space<vmem>>, vector<32x32xbf16>
    %c0_6 = arith.constant 0 : index
    %c384 = arith.constant 384 : index
    %6 = vector.load %arg2[%c0_6, %c384] : memref<32x416xbf16, #tpu.memory_space<vmem>>, vector<32x32xbf16>
    %c0_7 = arith.constant 0 : index
    %c0_8 = arith.constant 0 : index
    %7 = vector.load %arg3[%c0_7, %c0_8] : memref<1x256xf32, #tpu.memory_space<vmem>>, vector<1x128xf32>
    %c0_9 = arith.constant 0 : index
    %c128_10 = arith.constant 128 : index
    %8 = vector.load %arg3[%c0_9, %c128_10] : memref<1x256xf32, #tpu.memory_space<vmem>>, vector<1x32xf32>
    %c0_11 = arith.constant 0 : index
    %c160 = arith.constant 160 : index
    %9 = vector.load %arg3[%c0_11, %c160] : memref<1x256xf32, #tpu.memory_space<vmem>>, vector<1x32xf32>
    %c0_12 = arith.constant 0 : index
    %c192 = arith.constant 192 : index
    %10 = vector.load %arg3[%c0_12, %c192] : memref<1x256xf32, #tpu.memory_space<vmem>>, vector<1x32xf32>
    %c0_13 = arith.constant 0 : index
    %c224 = arith.constant 224 : index
    %11 = vector.load %arg3[%c0_13, %c224] : memref<1x256xf32, #tpu.memory_space<vmem>>, vector<1x32xf32>
    %c0_14 = arith.constant 0 : index
    %c0_15 = arith.constant 0 : index
    %12 = vector.load %arg0[%c0_14, %c0_15] : memref<64x1xi32, #tpu.memory_space<vmem>>, vector<64x1xi32>
    %13 = tpu.iota {dimensions = array<i32: 1>} : vector<64x16xi32>
    %14 = vector.broadcast %12 : vector<64x1xi32> to vector<64x16xi32>
    %15 = arith.cmpi eq, %14, %13 : vector<64x16xi32>
    %16 = arith.extui %15 : vector<64x16xi1> to vector<64x16xi32>
    %17 = arith.sitofp %16 : vector<64x16xi32> to vector<64x16xf32>
    %18 = arith.truncf %17 : vector<64x16xf32> to vector<64x16xbf16>
    %c0_16 = arith.constant 0 : index
    %c0_17 = arith.constant 0 : index
    %19 = vector.load %arg1[%c0_16, %c0_17] : memref<16x32xbf16, #tpu.memory_space<vmem>>, vector<16x32xbf16>
    %cst = arith.constant dense<0.000000e+00> : vector<16x128xf32>
    %20 = tpu.matmul %19, %0, %cst {dimension_numbers = #tpu.dot_dimension_numbers<[1], [0], [0], [1], [0, 0, 1, 1], [], []>} : vector<16x32xbf16>, vector<32x128xbf16>, vector<16x128xf32> -> vector<16x128xf32>
    %21 = arith.truncf %20 : vector<16x128xf32> to vector<16x128xbf16>
    %cst_18 = arith.constant dense<0.000000e+00> : vector<64x128xf32>
    %22 = tpu.matmul %18, %21, %cst_18 {dimension_numbers = #tpu.dot_dimension_numbers<[1], [0], [0], [1], [0, 0, 1, 1], [], []>} : vector<64x16xbf16>, vector<16x128xbf16>, vector<64x128xf32> -> vector<64x128xf32>
    %23 = vector.broadcast %7 : vector<1x128xf32> to vector<64x128xf32>
    %24 = arith.addf %22, %23 : vector<64x128xf32>
    %cst_19 = arith.constant 0.000000e+00 : f32
    %25 = vector.broadcast %cst_19 : f32 to vector<8x32xf32>
    %cst_20 = arith.constant 0.000000e+00 : f32
    %26 = vector.broadcast %cst_20 : f32 to vector<8x32xf32>
    %27 = vector.extract_strided_slice %24 {offsets = [0, 0], sizes = [8, 128], strides = [1, 1]} : vector<64x128xf32> to vector<8x128xf32>
    %28 = arith.truncf %25 : vector<8x32xf32> to vector<8x32xbf16>
    %cst_21 = arith.constant dense<0.000000e+00> : vector<8x128xf32>
    %29 = tpu.matmul %28, %1, %cst_21 {dimension_numbers = #tpu.dot_dimension_numbers<[1], [0], [0], [1], [0, 0, 1, 1], [], []>} : vector<8x32xbf16>, vector<32x128xbf16>, vector<8x128xf32> -> vector<8x128xf32>
    %30 = arith.addf %27, %29 : vector<8x128xf32>
    %31 = arith.negf %30 : vector<8x128xf32>
    %32 = math.exp %31 : vector<8x128xf32>
    %cst_22 = arith.constant 1.000000e+00 : f32
    %33 = vector.broadcast %cst_22 : f32 to vector<8x128xf32>
    %34 = arith.addf %33, %32 : vector<8x128xf32>
    %35 = arith.divf %33, %34 : vector<8x128xf32>
    %36 = math.tanh %30 : vector<8x128xf32>
    %37 = vector.extract_strided_slice %35 {offsets = [0, 0], sizes = [8, 32], strides = [1, 1]} : vector<8x128xf32> to vector<8x32xf32>
    %38 = vector.extract_strided_slice %35 {offsets = [0, 32], sizes = [8, 32], strides = [1, 1]} : vector<8x128xf32> to vector<8x32xf32>
    %39 = vector.extract_strided_slice %36 {offsets = [0, 64], sizes = [8, 32], strides = [1, 1]} : vector<8x128xf32> to vector<8x32xf32>
    %40 = vector.extract_strided_slice %35 {offsets = [0, 96], sizes = [8, 32], strides = [1, 1]} : vector<8x128xf32> to vector<8x32xf32>
    %41 = arith.mulf %38, %26 : vector<8x32xf32>
    %42 = arith.mulf %37, %39 : vector<8x32xf32>
    %43 = arith.addf %41, %42 : vector<8x32xf32>
    %44 = math.tanh %43 : vector<8x32xf32>
    %45 = arith.mulf %40, %44 : vector<8x32xf32>
    %46 = vector.extract_strided_slice %24 {offsets = [8, 0], sizes = [8, 128], strides = [1, 1]} : vector<64x128xf32> to vector<8x128xf32>
    %47 = arith.truncf %45 : vector<8x32xf32> to vector<8x32xbf16>
    %cst_23 = arith.constant dense<0.000000e+00> : vector<8x128xf32>
    %48 = tpu.matmul %47, %1, %cst_23 {dimension_numbers = #tpu.dot_dimension_numbers<[1], [0], [0], [1], [0, 0, 1, 1], [], []>} : vector<8x32xbf16>, vector<32x128xbf16>, vector<8x128xf32> -> vector<8x128xf32>
    %49 = arith.addf %46, %48 : vector<8x128xf32>
    %50 = arith.negf %49 : vector<8x128xf32>
    %51 = math.exp %50 : vector<8x128xf32>
    %cst_24 = arith.constant 1.000000e+00 : f32
    %52 = vector.broadcast %cst_24 : f32 to vector<8x128xf32>
    %53 = arith.addf %52, %51 : vector<8x128xf32>
    %54 = arith.divf %52, %53 : vector<8x128xf32>
    %55 = math.tanh %49 : vector<8x128xf32>
    %56 = vector.extract_strided_slice %54 {offsets = [0, 0], sizes = [8, 32], strides = [1, 1]} : vector<8x128xf32> to vector<8x32xf32>
    %57 = vector.extract_strided_slice %54 {offsets = [0, 32], sizes = [8, 32], strides = [1, 1]} : vector<8x128xf32> to vector<8x32xf32>
    %58 = vector.extract_strided_slice %55 {offsets = [0, 64], sizes = [8, 32], strides = [1, 1]} : vector<8x128xf32> to vector<8x32xf32>
    %59 = vector.extract_strided_slice %54 {offsets = [0, 96], sizes = [8, 32], strides = [1, 1]} : vector<8x128xf32> to vector<8x32xf32>
    %60 = arith.mulf %57, %43 : vector<8x32xf32>
    %61 = arith.mulf %56, %58 : vector<8x32xf32>
    %62 = arith.addf %60, %61 : vector<8x32xf32>
    %63 = math.tanh %62 : vector<8x32xf32>
    %64 = arith.mulf %59, %63 : vector<8x32xf32>
    %65 = vector.extract_strided_slice %24 {offsets = [16, 0], sizes = [8, 128], strides = [1, 1]} : vector<64x128xf32> to vector<8x128xf32>
    %66 = arith.truncf %64 : vector<8x32xf32> to vector<8x32xbf16>
    %cst_25 = arith.constant dense<0.000000e+00> : vector<8x128xf32>
    %67 = tpu.matmul %66, %1, %cst_25 {dimension_numbers = #tpu.dot_dimension_numbers<[1], [0], [0], [1], [0, 0, 1, 1], [], []>} : vector<8x32xbf16>, vector<32x128xbf16>, vector<8x128xf32> -> vector<8x128xf32>
    %68 = arith.addf %65, %67 : vector<8x128xf32>
    %69 = arith.negf %68 : vector<8x128xf32>
    %70 = math.exp %69 : vector<8x128xf32>
    %cst_26 = arith.constant 1.000000e+00 : f32
    %71 = vector.broadcast %cst_26 : f32 to vector<8x128xf32>
    %72 = arith.addf %71, %70 : vector<8x128xf32>
    %73 = arith.divf %71, %72 : vector<8x128xf32>
    %74 = math.tanh %68 : vector<8x128xf32>
    %75 = vector.extract_strided_slice %73 {offsets = [0, 0], sizes = [8, 32], strides = [1, 1]} : vector<8x128xf32> to vector<8x32xf32>
    %76 = vector.extract_strided_slice %73 {offsets = [0, 32], sizes = [8, 32], strides = [1, 1]} : vector<8x128xf32> to vector<8x32xf32>
    %77 = vector.extract_strided_slice %74 {offsets = [0, 64], sizes = [8, 32], strides = [1, 1]} : vector<8x128xf32> to vector<8x32xf32>
    %78 = vector.extract_strided_slice %73 {offsets = [0, 96], sizes = [8, 32], strides = [1, 1]} : vector<8x128xf32> to vector<8x32xf32>
    %79 = arith.mulf %76, %62 : vector<8x32xf32>
    %80 = arith.mulf %75, %77 : vector<8x32xf32>
    %81 = arith.addf %79, %80 : vector<8x32xf32>
    %82 = math.tanh %81 : vector<8x32xf32>
    %83 = arith.mulf %78, %82 : vector<8x32xf32>
    %84 = vector.extract_strided_slice %24 {offsets = [24, 0], sizes = [8, 128], strides = [1, 1]} : vector<64x128xf32> to vector<8x128xf32>
    %85 = arith.truncf %83 : vector<8x32xf32> to vector<8x32xbf16>
    %cst_27 = arith.constant dense<0.000000e+00> : vector<8x128xf32>
    %86 = tpu.matmul %85, %1, %cst_27 {dimension_numbers = #tpu.dot_dimension_numbers<[1], [0], [0], [1], [0, 0, 1, 1], [], []>} : vector<8x32xbf16>, vector<32x128xbf16>, vector<8x128xf32> -> vector<8x128xf32>
    %87 = arith.addf %84, %86 : vector<8x128xf32>
    %88 = arith.negf %87 : vector<8x128xf32>
    %89 = math.exp %88 : vector<8x128xf32>
    %cst_28 = arith.constant 1.000000e+00 : f32
    %90 = vector.broadcast %cst_28 : f32 to vector<8x128xf32>
    %91 = arith.addf %90, %89 : vector<8x128xf32>
    %92 = arith.divf %90, %91 : vector<8x128xf32>
    %93 = math.tanh %87 : vector<8x128xf32>
    %94 = vector.extract_strided_slice %92 {offsets = [0, 0], sizes = [8, 32], strides = [1, 1]} : vector<8x128xf32> to vector<8x32xf32>
    %95 = vector.extract_strided_slice %92 {offsets = [0, 32], sizes = [8, 32], strides = [1, 1]} : vector<8x128xf32> to vector<8x32xf32>
    %96 = vector.extract_strided_slice %93 {offsets = [0, 64], sizes = [8, 32], strides = [1, 1]} : vector<8x128xf32> to vector<8x32xf32>
    %97 = vector.extract_strided_slice %92 {offsets = [0, 96], sizes = [8, 32], strides = [1, 1]} : vector<8x128xf32> to vector<8x32xf32>
    %98 = arith.mulf %95, %81 : vector<8x32xf32>
    %99 = arith.mulf %94, %96 : vector<8x32xf32>
    %100 = arith.addf %98, %99 : vector<8x32xf32>
    %101 = math.tanh %100 : vector<8x32xf32>
    %102 = arith.mulf %97, %101 : vector<8x32xf32>
    %103 = vector.extract_strided_slice %24 {offsets = [32, 0], sizes = [8, 128], strides = [1, 1]} : vector<64x128xf32> to vector<8x128xf32>
    %104 = arith.truncf %102 : vector<8x32xf32> to vector<8x32xbf16>
    %cst_29 = arith.constant dense<0.000000e+00> : vector<8x128xf32>
    %105 = tpu.matmul %104, %1, %cst_29 {dimension_numbers = #tpu.dot_dimension_numbers<[1], [0], [0], [1], [0, 0, 1, 1], [], []>} : vector<8x32xbf16>, vector<32x128xbf16>, vector<8x128xf32> -> vector<8x128xf32>
    %106 = arith.addf %103, %105 : vector<8x128xf32>
    %107 = arith.negf %106 : vector<8x128xf32>
    %108 = math.exp %107 : vector<8x128xf32>
    %cst_30 = arith.constant 1.000000e+00 : f32
    %109 = vector.broadcast %cst_30 : f32 to vector<8x128xf32>
    %110 = arith.addf %109, %108 : vector<8x128xf32>
    %111 = arith.divf %109, %110 : vector<8x128xf32>
    %112 = math.tanh %106 : vector<8x128xf32>
    %113 = vector.extract_strided_slice %111 {offsets = [0, 0], sizes = [8, 32], strides = [1, 1]} : vector<8x128xf32> to vector<8x32xf32>
    %114 = vector.extract_strided_slice %111 {offsets = [0, 32], sizes = [8, 32], strides = [1, 1]} : vector<8x128xf32> to vector<8x32xf32>
    %115 = vector.extract_strided_slice %112 {offsets = [0, 64], sizes = [8, 32], strides = [1, 1]} : vector<8x128xf32> to vector<8x32xf32>
    %116 = vector.extract_strided_slice %111 {offsets = [0, 96], sizes = [8, 32], strides = [1, 1]} : vector<8x128xf32> to vector<8x32xf32>
    %117 = arith.mulf %114, %100 : vector<8x32xf32>
    %118 = arith.mulf %113, %115 : vector<8x32xf32>
    %119 = arith.addf %117, %118 : vector<8x32xf32>
    %120 = math.tanh %119 : vector<8x32xf32>
    %121 = arith.mulf %116, %120 : vector<8x32xf32>
    %122 = vector.extract_strided_slice %24 {offsets = [40, 0], sizes = [8, 128], strides = [1, 1]} : vector<64x128xf32> to vector<8x128xf32>
    %123 = arith.truncf %121 : vector<8x32xf32> to vector<8x32xbf16>
    %cst_31 = arith.constant dense<0.000000e+00> : vector<8x128xf32>
    %124 = tpu.matmul %123, %1, %cst_31 {dimension_numbers = #tpu.dot_dimension_numbers<[1], [0], [0], [1], [0, 0, 1, 1], [], []>} : vector<8x32xbf16>, vector<32x128xbf16>, vector<8x128xf32> -> vector<8x128xf32>
    %125 = arith.addf %122, %124 : vector<8x128xf32>
    %126 = arith.negf %125 : vector<8x128xf32>
    %127 = math.exp %126 : vector<8x128xf32>
    %cst_32 = arith.constant 1.000000e+00 : f32
    %128 = vector.broadcast %cst_32 : f32 to vector<8x128xf32>
    %129 = arith.addf %128, %127 : vector<8x128xf32>
    %130 = arith.divf %128, %129 : vector<8x128xf32>
    %131 = math.tanh %125 : vector<8x128xf32>
    %132 = vector.extract_strided_slice %130 {offsets = [0, 0], sizes = [8, 32], strides = [1, 1]} : vector<8x128xf32> to vector<8x32xf32>
    %133 = vector.extract_strided_slice %130 {offsets = [0, 32], sizes = [8, 32], strides = [1, 1]} : vector<8x128xf32> to vector<8x32xf32>
    %134 = vector.extract_strided_slice %131 {offsets = [0, 64], sizes = [8, 32], strides = [1, 1]} : vector<8x128xf32> to vector<8x32xf32>
    %135 = vector.extract_strided_slice %130 {offsets = [0, 96], sizes = [8, 32], strides = [1, 1]} : vector<8x128xf32> to vector<8x32xf32>
    %136 = arith.mulf %133, %119 : vector<8x32xf32>
    %137 = arith.mulf %132, %134 : vector<8x32xf32>
    %138 = arith.addf %136, %137 : vector<8x32xf32>
    %139 = math.tanh %138 : vector<8x32xf32>
    %140 = arith.mulf %135, %139 : vector<8x32xf32>
    %141 = vector.extract_strided_slice %24 {offsets = [48, 0], sizes = [8, 128], strides = [1, 1]} : vector<64x128xf32> to vector<8x128xf32>
    %142 = arith.truncf %140 : vector<8x32xf32> to vector<8x32xbf16>
    %cst_33 = arith.constant dense<0.000000e+00> : vector<8x128xf32>
    %143 = tpu.matmul %142, %1, %cst_33 {dimension_numbers = #tpu.dot_dimension_numbers<[1], [0], [0], [1], [0, 0, 1, 1], [], []>} : vector<8x32xbf16>, vector<32x128xbf16>, vector<8x128xf32> -> vector<8x128xf32>
    %144 = arith.addf %141, %143 : vector<8x128xf32>
    %145 = arith.negf %144 : vector<8x128xf32>
    %146 = math.exp %145 : vector<8x128xf32>
    %cst_34 = arith.constant 1.000000e+00 : f32
    %147 = vector.broadcast %cst_34 : f32 to vector<8x128xf32>
    %148 = arith.addf %147, %146 : vector<8x128xf32>
    %149 = arith.divf %147, %148 : vector<8x128xf32>
    %150 = math.tanh %144 : vector<8x128xf32>
    %151 = vector.extract_strided_slice %149 {offsets = [0, 0], sizes = [8, 32], strides = [1, 1]} : vector<8x128xf32> to vector<8x32xf32>
    %152 = vector.extract_strided_slice %149 {offsets = [0, 32], sizes = [8, 32], strides = [1, 1]} : vector<8x128xf32> to vector<8x32xf32>
    %153 = vector.extract_strided_slice %150 {offsets = [0, 64], sizes = [8, 32], strides = [1, 1]} : vector<8x128xf32> to vector<8x32xf32>
    %154 = vector.extract_strided_slice %149 {offsets = [0, 96], sizes = [8, 32], strides = [1, 1]} : vector<8x128xf32> to vector<8x32xf32>
    %155 = arith.mulf %152, %138 : vector<8x32xf32>
    %156 = arith.mulf %151, %153 : vector<8x32xf32>
    %157 = arith.addf %155, %156 : vector<8x32xf32>
    %158 = math.tanh %157 : vector<8x32xf32>
    %159 = arith.mulf %154, %158 : vector<8x32xf32>
    %160 = vector.extract_strided_slice %24 {offsets = [56, 0], sizes = [8, 128], strides = [1, 1]} : vector<64x128xf32> to vector<8x128xf32>
    %161 = arith.truncf %159 : vector<8x32xf32> to vector<8x32xbf16>
    %cst_35 = arith.constant dense<0.000000e+00> : vector<8x128xf32>
    %162 = tpu.matmul %161, %1, %cst_35 {dimension_numbers = #tpu.dot_dimension_numbers<[1], [0], [0], [1], [0, 0, 1, 1], [], []>} : vector<8x32xbf16>, vector<32x128xbf16>, vector<8x128xf32> -> vector<8x128xf32>
    %163 = arith.addf %160, %162 : vector<8x128xf32>
    %164 = arith.negf %163 : vector<8x128xf32>
    %165 = math.exp %164 : vector<8x128xf32>
    %cst_36 = arith.constant 1.000000e+00 : f32
    %166 = vector.broadcast %cst_36 : f32 to vector<8x128xf32>
    %167 = arith.addf %166, %165 : vector<8x128xf32>
    %168 = arith.divf %166, %167 : vector<8x128xf32>
    %169 = math.tanh %163 : vector<8x128xf32>
    %170 = vector.extract_strided_slice %168 {offsets = [0, 0], sizes = [8, 32], strides = [1, 1]} : vector<8x128xf32> to vector<8x32xf32>
    %171 = vector.extract_strided_slice %168 {offsets = [0, 32], sizes = [8, 32], strides = [1, 1]} : vector<8x128xf32> to vector<8x32xf32>
    %172 = vector.extract_strided_slice %169 {offsets = [0, 64], sizes = [8, 32], strides = [1, 1]} : vector<8x128xf32> to vector<8x32xf32>
    %173 = vector.extract_strided_slice %168 {offsets = [0, 96], sizes = [8, 32], strides = [1, 1]} : vector<8x128xf32> to vector<8x32xf32>
    %174 = arith.mulf %171, %157 : vector<8x32xf32>
    %175 = arith.mulf %170, %172 : vector<8x32xf32>
    %176 = arith.addf %174, %175 : vector<8x32xf32>
    %177 = math.tanh %176 : vector<8x32xf32>
    %178 = arith.mulf %173, %177 : vector<8x32xf32>
    %179 = tpu.concatenate %64, %83, %102, %121, %140, %159, %178 in 0 : vector<8x32xf32>, vector<8x32xf32>, vector<8x32xf32>, vector<8x32xf32>, vector<8x32xf32>, vector<8x32xf32>, vector<8x32xf32> -> vector<56x32xf32>
    %180 = arith.truncf %179 : vector<56x32xf32> to vector<56x32xbf16>
    %cst_37 = arith.constant dense<0.000000e+00> : vector<56x32xf32>
    %181 = tpu.matmul %180, %3, %cst_37 {dimension_numbers = #tpu.dot_dimension_numbers<[1], [0], [0], [1], [0, 0, 1, 1], [], []>} : vector<56x32xbf16>, vector<32x32xbf16>, vector<56x32xf32> -> vector<56x32xf32>
    %182 = vector.broadcast %8 : vector<1x32xf32> to vector<56x32xf32>
    %183 = arith.addf %181, %182 : vector<56x32xf32>
    %184 = vector.shape_cast %9 : vector<1x32xf32> to vector<1x32xf32>
    %185 = vector.broadcast %184 : vector<1x32xf32> to vector<8x32xf32>
    %186 = arith.truncf %45 : vector<8x32xf32> to vector<8x32xbf16>
    %cst_38 = arith.constant dense<0.000000e+00> : vector<8x32xf32>
    %187 = tpu.matmul %186, %2, %cst_38 {dimension_numbers = #tpu.dot_dimension_numbers<[1], [0], [0], [1], [0, 0, 1, 1], [], []>} : vector<8x32xbf16>, vector<32x32xbf16>, vector<8x32xf32> -> vector<8x32xf32>
    %188 = vector.extract_strided_slice %183 {offsets = [0, 0], sizes = [8, 32], strides = [1, 1]} : vector<56x32xf32> to vector<8x32xf32>
    %189 = arith.addf %187, %188 : vector<8x32xf32>
    %cst_39 = arith.constant 0.000000e+00 : f32
    %190 = vector.broadcast %cst_39 : f32 to vector<8x32xf32>
    %191 = arith.cmpf ogt, %189, %190 : vector<8x32xf32>
    %cst_40 = arith.constant 0.00999999977 : f32
    %192 = vector.broadcast %cst_40 : f32 to vector<8x32xf32>
    %193 = arith.mulf %192, %189 : vector<8x32xf32>
    %194 = arith.select %191, %189, %193 : vector<8x32xi1>, vector<8x32xf32>
    %195 = arith.truncf %194 : vector<8x32xf32> to vector<8x32xbf16>
    %cst_41 = arith.constant dense<0.000000e+00> : vector<8x32xf32>
    %196 = tpu.matmul %195, %4, %cst_41 {dimension_numbers = #tpu.dot_dimension_numbers<[1], [0], [0], [1], [0, 0, 1, 1], [], []>} : vector<8x32xbf16>, vector<32x32xbf16>, vector<8x32xf32> -> vector<8x32xf32>
    %197 = arith.addf %196, %185 : vector<8x32xf32>
    %cst_42 = arith.constant 0.000000e+00 : f32
    %198 = vector.broadcast %cst_42 : f32 to vector<8x32xf32>
    %199 = arith.cmpf ogt, %197, %198 : vector<8x32xf32>
    %cst_43 = arith.constant 0.00999999977 : f32
    %200 = vector.broadcast %cst_43 : f32 to vector<8x32xf32>
    %201 = arith.mulf %200, %197 : vector<8x32xf32>
    %202 = arith.select %199, %197, %201 : vector<8x32xi1>, vector<8x32xf32>
    %203 = arith.truncf %202 : vector<8x32xf32> to vector<8x32xbf16>
    %cst_44 = arith.constant dense<0.000000e+00> : vector<8x32xf32>
    %204 = tpu.matmul %203, %2, %cst_44 {dimension_numbers = #tpu.dot_dimension_numbers<[1], [0], [0], [1], [0, 0, 1, 1], [], []>} : vector<8x32xbf16>, vector<32x32xbf16>, vector<8x32xf32> -> vector<8x32xf32>
    %205 = vector.extract_strided_slice %183 {offsets = [8, 0], sizes = [8, 32], strides = [1, 1]} : vector<56x32xf32> to vector<8x32xf32>
    %206 = arith.addf %204, %205 : vector<8x32xf32>
    %cst_45 = arith.constant 0.000000e+00 : f32
    %207 = vector.broadcast %cst_45 : f32 to vector<8x32xf32>
    %208 = arith.cmpf ogt, %206, %207 : vector<8x32xf32>
    %cst_46 = arith.constant 0.00999999977 : f32
    %209 = vector.broadcast %cst_46 : f32 to vector<8x32xf32>
    %210 = arith.mulf %209, %206 : vector<8x32xf32>
    %211 = arith.select %208, %206, %210 : vector<8x32xi1>, vector<8x32xf32>
    %212 = arith.truncf %211 : vector<8x32xf32> to vector<8x32xbf16>
    %cst_47 = arith.constant dense<0.000000e+00> : vector<8x32xf32>
    %213 = tpu.matmul %212, %4, %cst_47 {dimension_numbers = #tpu.dot_dimension_numbers<[1], [0], [0], [1], [0, 0, 1, 1], [], []>} : vector<8x32xbf16>, vector<32x32xbf16>, vector<8x32xf32> -> vector<8x32xf32>
    %214 = arith.addf %213, %185 : vector<8x32xf32>
    %cst_48 = arith.constant 0.000000e+00 : f32
    %215 = vector.broadcast %cst_48 : f32 to vector<8x32xf32>
    %216 = arith.cmpf ogt, %214, %215 : vector<8x32xf32>
    %cst_49 = arith.constant 0.00999999977 : f32
    %217 = vector.broadcast %cst_49 : f32 to vector<8x32xf32>
    %218 = arith.mulf %217, %214 : vector<8x32xf32>
    %219 = arith.select %216, %214, %218 : vector<8x32xi1>, vector<8x32xf32>
    %220 = arith.truncf %219 : vector<8x32xf32> to vector<8x32xbf16>
    %cst_50 = arith.constant dense<0.000000e+00> : vector<8x32xf32>
    %221 = tpu.matmul %220, %2, %cst_50 {dimension_numbers = #tpu.dot_dimension_numbers<[1], [0], [0], [1], [0, 0, 1, 1], [], []>} : vector<8x32xbf16>, vector<32x32xbf16>, vector<8x32xf32> -> vector<8x32xf32>
    %222 = vector.extract_strided_slice %183 {offsets = [16, 0], sizes = [8, 32], strides = [1, 1]} : vector<56x32xf32> to vector<8x32xf32>
    %223 = arith.addf %221, %222 : vector<8x32xf32>
    %cst_51 = arith.constant 0.000000e+00 : f32
    %224 = vector.broadcast %cst_51 : f32 to vector<8x32xf32>
    %225 = arith.cmpf ogt, %223, %224 : vector<8x32xf32>
    %cst_52 = arith.constant 0.00999999977 : f32
    %226 = vector.broadcast %cst_52 : f32 to vector<8x32xf32>
    %227 = arith.mulf %226, %223 : vector<8x32xf32>
    %228 = arith.select %225, %223, %227 : vector<8x32xi1>, vector<8x32xf32>
    %229 = arith.truncf %228 : vector<8x32xf32> to vector<8x32xbf16>
    %cst_53 = arith.constant dense<0.000000e+00> : vector<8x32xf32>
    %230 = tpu.matmul %229, %4, %cst_53 {dimension_numbers = #tpu.dot_dimension_numbers<[1], [0], [0], [1], [0, 0, 1, 1], [], []>} : vector<8x32xbf16>, vector<32x32xbf16>, vector<8x32xf32> -> vector<8x32xf32>
    %231 = arith.addf %230, %185 : vector<8x32xf32>
    %cst_54 = arith.constant 0.000000e+00 : f32
    %232 = vector.broadcast %cst_54 : f32 to vector<8x32xf32>
    %233 = arith.cmpf ogt, %231, %232 : vector<8x32xf32>
    %cst_55 = arith.constant 0.00999999977 : f32
    %234 = vector.broadcast %cst_55 : f32 to vector<8x32xf32>
    %235 = arith.mulf %234, %231 : vector<8x32xf32>
    %236 = arith.select %233, %231, %235 : vector<8x32xi1>, vector<8x32xf32>
    %237 = arith.truncf %236 : vector<8x32xf32> to vector<8x32xbf16>
    %cst_56 = arith.constant dense<0.000000e+00> : vector<8x32xf32>
    %238 = tpu.matmul %237, %2, %cst_56 {dimension_numbers = #tpu.dot_dimension_numbers<[1], [0], [0], [1], [0, 0, 1, 1], [], []>} : vector<8x32xbf16>, vector<32x32xbf16>, vector<8x32xf32> -> vector<8x32xf32>
    %239 = vector.extract_strided_slice %183 {offsets = [24, 0], sizes = [8, 32], strides = [1, 1]} : vector<56x32xf32> to vector<8x32xf32>
    %240 = arith.addf %238, %239 : vector<8x32xf32>
    %cst_57 = arith.constant 0.000000e+00 : f32
    %241 = vector.broadcast %cst_57 : f32 to vector<8x32xf32>
    %242 = arith.cmpf ogt, %240, %241 : vector<8x32xf32>
    %cst_58 = arith.constant 0.00999999977 : f32
    %243 = vector.broadcast %cst_58 : f32 to vector<8x32xf32>
    %244 = arith.mulf %243, %240 : vector<8x32xf32>
    %245 = arith.select %242, %240, %244 : vector<8x32xi1>, vector<8x32xf32>
    %246 = arith.truncf %245 : vector<8x32xf32> to vector<8x32xbf16>
    %cst_59 = arith.constant dense<0.000000e+00> : vector<8x32xf32>
    %247 = tpu.matmul %246, %4, %cst_59 {dimension_numbers = #tpu.dot_dimension_numbers<[1], [0], [0], [1], [0, 0, 1, 1], [], []>} : vector<8x32xbf16>, vector<32x32xbf16>, vector<8x32xf32> -> vector<8x32xf32>
    %248 = arith.addf %247, %185 : vector<8x32xf32>
    %cst_60 = arith.constant 0.000000e+00 : f32
    %249 = vector.broadcast %cst_60 : f32 to vector<8x32xf32>
    %250 = arith.cmpf ogt, %248, %249 : vector<8x32xf32>
    %cst_61 = arith.constant 0.00999999977 : f32
    %251 = vector.broadcast %cst_61 : f32 to vector<8x32xf32>
    %252 = arith.mulf %251, %248 : vector<8x32xf32>
    %253 = arith.select %250, %248, %252 : vector<8x32xi1>, vector<8x32xf32>
    %254 = arith.truncf %253 : vector<8x32xf32> to vector<8x32xbf16>
    %cst_62 = arith.constant dense<0.000000e+00> : vector<8x32xf32>
    %255 = tpu.matmul %254, %2, %cst_62 {dimension_numbers = #tpu.dot_dimension_numbers<[1], [0], [0], [1], [0, 0, 1, 1], [], []>} : vector<8x32xbf16>, vector<32x32xbf16>, vector<8x32xf32> -> vector<8x32xf32>
    %256 = vector.extract_strided_slice %183 {offsets = [32, 0], sizes = [8, 32], strides = [1, 1]} : vector<56x32xf32> to vector<8x32xf32>
    %257 = arith.addf %255, %256 : vector<8x32xf32>
    %cst_63 = arith.constant 0.000000e+00 : f32
    %258 = vector.broadcast %cst_63 : f32 to vector<8x32xf32>
    %259 = arith.cmpf ogt, %257, %258 : vector<8x32xf32>
    %cst_64 = arith.constant 0.00999999977 : f32
    %260 = vector.broadcast %cst_64 : f32 to vector<8x32xf32>
    %261 = arith.mulf %260, %257 : vector<8x32xf32>
    %262 = arith.select %259, %257, %261 : vector<8x32xi1>, vector<8x32xf32>
    %263 = arith.truncf %262 : vector<8x32xf32> to vector<8x32xbf16>
    %cst_65 = arith.constant dense<0.000000e+00> : vector<8x32xf32>
    %264 = tpu.matmul %263, %4, %cst_65 {dimension_numbers = #tpu.dot_dimension_numbers<[1], [0], [0], [1], [0, 0, 1, 1], [], []>} : vector<8x32xbf16>, vector<32x32xbf16>, vector<8x32xf32> -> vector<8x32xf32>
    %265 = arith.addf %264, %185 : vector<8x32xf32>
    %cst_66 = arith.constant 0.000000e+00 : f32
    %266 = vector.broadcast %cst_66 : f32 to vector<8x32xf32>
    %267 = arith.cmpf ogt, %265, %266 : vector<8x32xf32>
    %cst_67 = arith.constant 0.00999999977 : f32
    %268 = vector.broadcast %cst_67 : f32 to vector<8x32xf32>
    %269 = arith.mulf %268, %265 : vector<8x32xf32>
    %270 = arith.select %267, %265, %269 : vector<8x32xi1>, vector<8x32xf32>
    %271 = arith.truncf %270 : vector<8x32xf32> to vector<8x32xbf16>
    %cst_68 = arith.constant dense<0.000000e+00> : vector<8x32xf32>
    %272 = tpu.matmul %271, %2, %cst_68 {dimension_numbers = #tpu.dot_dimension_numbers<[1], [0], [0], [1], [0, 0, 1, 1], [], []>} : vector<8x32xbf16>, vector<32x32xbf16>, vector<8x32xf32> -> vector<8x32xf32>
    %273 = vector.extract_strided_slice %183 {offsets = [40, 0], sizes = [8, 32], strides = [1, 1]} : vector<56x32xf32> to vector<8x32xf32>
    %274 = arith.addf %272, %273 : vector<8x32xf32>
    %cst_69 = arith.constant 0.000000e+00 : f32
    %275 = vector.broadcast %cst_69 : f32 to vector<8x32xf32>
    %276 = arith.cmpf ogt, %274, %275 : vector<8x32xf32>
    %cst_70 = arith.constant 0.00999999977 : f32
    %277 = vector.broadcast %cst_70 : f32 to vector<8x32xf32>
    %278 = arith.mulf %277, %274 : vector<8x32xf32>
    %279 = arith.select %276, %274, %278 : vector<8x32xi1>, vector<8x32xf32>
    %280 = arith.truncf %279 : vector<8x32xf32> to vector<8x32xbf16>
    %cst_71 = arith.constant dense<0.000000e+00> : vector<8x32xf32>
    %281 = tpu.matmul %280, %4, %cst_71 {dimension_numbers = #tpu.dot_dimension_numbers<[1], [0], [0], [1], [0, 0, 1, 1], [], []>} : vector<8x32xbf16>, vector<32x32xbf16>, vector<8x32xf32> -> vector<8x32xf32>
    %282 = arith.addf %281, %185 : vector<8x32xf32>
    %cst_72 = arith.constant 0.000000e+00 : f32
    %283 = vector.broadcast %cst_72 : f32 to vector<8x32xf32>
    %284 = arith.cmpf ogt, %282, %283 : vector<8x32xf32>
    %cst_73 = arith.constant 0.00999999977 : f32
    %285 = vector.broadcast %cst_73 : f32 to vector<8x32xf32>
    %286 = arith.mulf %285, %282 : vector<8x32xf32>
    %287 = arith.select %284, %282, %286 : vector<8x32xi1>, vector<8x32xf32>
    %288 = arith.truncf %287 : vector<8x32xf32> to vector<8x32xbf16>
    %cst_74 = arith.constant dense<0.000000e+00> : vector<8x32xf32>
    %289 = tpu.matmul %288, %2, %cst_74 {dimension_numbers = #tpu.dot_dimension_numbers<[1], [0], [0], [1], [0, 0, 1, 1], [], []>} : vector<8x32xbf16>, vector<32x32xbf16>, vector<8x32xf32> -> vector<8x32xf32>
    %290 = vector.extract_strided_slice %183 {offsets = [48, 0], sizes = [8, 32], strides = [1, 1]} : vector<56x32xf32> to vector<8x32xf32>
    %291 = arith.addf %289, %290 : vector<8x32xf32>
    %cst_75 = arith.constant 0.000000e+00 : f32
    %292 = vector.broadcast %cst_75 : f32 to vector<8x32xf32>
    %293 = arith.cmpf ogt, %291, %292 : vector<8x32xf32>
    %cst_76 = arith.constant 0.00999999977 : f32
    %294 = vector.broadcast %cst_76 : f32 to vector<8x32xf32>
    %295 = arith.mulf %294, %291 : vector<8x32xf32>
    %296 = arith.select %293, %291, %295 : vector<8x32xi1>, vector<8x32xf32>
    %297 = arith.truncf %296 : vector<8x32xf32> to vector<8x32xbf16>
    %cst_77 = arith.constant dense<0.000000e+00> : vector<8x32xf32>
    %298 = tpu.matmul %297, %4, %cst_77 {dimension_numbers = #tpu.dot_dimension_numbers<[1], [0], [0], [1], [0, 0, 1, 1], [], []>} : vector<8x32xbf16>, vector<32x32xbf16>, vector<8x32xf32> -> vector<8x32xf32>
    %299 = arith.addf %298, %185 : vector<8x32xf32>
    %cst_78 = arith.constant 0.000000e+00 : f32
    %300 = vector.broadcast %cst_78 : f32 to vector<8x32xf32>
    %301 = arith.cmpf ogt, %299, %300 : vector<8x32xf32>
    %cst_79 = arith.constant 0.00999999977 : f32
    %302 = vector.broadcast %cst_79 : f32 to vector<8x32xf32>
    %303 = arith.mulf %302, %299 : vector<8x32xf32>
    %304 = arith.select %301, %299, %303 : vector<8x32xi1>, vector<8x32xf32>
    %305 = arith.truncf %304 : vector<8x32xf32> to vector<8x32xbf16>
    %cst_80 = arith.constant dense<0.000000e+00> : vector<8x32xf32>
    %306 = tpu.matmul %305, %5, %cst_80 {dimension_numbers = #tpu.dot_dimension_numbers<[1], [0], [0], [1], [0, 0, 1, 1], [], []>} : vector<8x32xbf16>, vector<32x32xbf16>, vector<8x32xf32> -> vector<8x32xf32>
    %307 = vector.broadcast %10 : vector<1x32xf32> to vector<8x32xf32>
    %308 = arith.addf %306, %307 : vector<8x32xf32>
    %cst_81 = arith.constant 0.000000e+00 : f32
    %309 = vector.broadcast %cst_81 : f32 to vector<8x32xf32>
    %310 = arith.maximumf %308, %309 : vector<8x32xf32>
    %311 = arith.truncf %310 : vector<8x32xf32> to vector<8x32xbf16>
    %cst_82 = arith.constant dense<0.000000e+00> : vector<8x32xf32>
    %312 = tpu.matmul %311, %6, %cst_82 {dimension_numbers = #tpu.dot_dimension_numbers<[1], [0], [0], [1], [0, 0, 1, 1], [], []>} : vector<8x32xbf16>, vector<32x32xbf16>, vector<8x32xf32> -> vector<8x32xf32>
    %313 = vector.broadcast %11 : vector<1x32xf32> to vector<8x32xf32>
    %314 = arith.addf %312, %313 : vector<8x32xf32>
    %315 = arith.mulf %314, %314 : vector<8x32xf32>
    %cst_83 = arith.constant dense<0.000000e+00> : vector<8xf32>
    %316 = vector.multi_reduction <add>, %315, %cst_83 [1] : vector<8x32xf32> to vector<8xf32>
    %317 = vector.shape_cast %316 : vector<8xf32> to vector<8x1xf32>
    %cst_84 = arith.constant 9.99999996E-13 : f32
    %318 = vector.broadcast %cst_84 : f32 to vector<8x1xf32>
    %319 = arith.addf %317, %318 : vector<8x1xf32>
    %320 = math.rsqrt %319 : vector<8x1xf32>
    %321 = vector.broadcast %320 : vector<8x1xf32> to vector<8x32xf32>
    %322 = arith.mulf %314, %321 : vector<8x32xf32>
    %c0_85 = arith.constant 0 : index
    %c0_86 = arith.constant 0 : index
    %323 = vector.load %arg5[%c0_85, %c0_86] : memref<8x32xf32, #tpu.memory_space<vmem>>, vector<8x32xf32>
    tpu.vector_store %arg5[%c0_85, %c0_86], %322 {strides = array<i32>} : memref<8x32xf32, #tpu.memory_space<vmem>>, vector<8x32xf32>,
    %cst_87 = arith.constant dense<0.000000e+00> : vector<8x8xf32>
    %324 = tpu.matmul %322, %322, %cst_87 {dimension_numbers = #tpu.dot_dimension_numbers<[1], [1], [0], [0], [0, 0, 1, 0], [], []>} : vector<8x32xf32>, vector<8x32xf32>, vector<8x8xf32> -> vector<8x8xf32>
    %325 = tpu.iota {dimensions = array<i32: 0>} : vector<8x8xi32>
    %326 = tpu.iota {dimensions = array<i32: 1>} : vector<8x8xi32>
    %327 = arith.cmpi eq, %325, %326 : vector<8x8xi32>
    %328 = arith.extui %327 : vector<8x8xi1> to vector<8x8xi32>
    %329 = arith.sitofp %328 : vector<8x8xi32> to vector<8x8xf32>
    %330 = arith.subf %324, %329 : vector<8x8xf32>
    %cst_88 = arith.constant 5.000000e-01 : f32
    %331 = vector.broadcast %cst_88 : f32 to vector<8x8xf32>
    %332 = arith.divf %330, %331 : vector<8x8xf32>
    %cst_89 = arith.constant dense<0xFF800000> : vector<8xf32>
    %333 = vector.multi_reduction <maximumf>, %332, %cst_89 [1] : vector<8x8xf32> to vector<8xf32>
    %334 = vector.shape_cast %333 : vector<8xf32> to vector<8x1xf32>
    %335 = vector.broadcast %334 : vector<8x1xf32> to vector<8x8xf32>
    %336 = arith.subf %332, %335 : vector<8x8xf32>
    %337 = math.exp %336 : vector<8x8xf32>
    %cst_90 = arith.constant dense<0.000000e+00> : vector<8xf32>
    %338 = vector.multi_reduction <add>, %337, %cst_90 [1] : vector<8x8xf32> to vector<8xf32>
    %339 = vector.shape_cast %338 : vector<8xf32> to vector<8x1xf32>
    %340 = math.log %339 : vector<8x1xf32>
    %341 = arith.addf %334, %340 : vector<8x1xf32>
    %342 = vector.broadcast %341 : vector<8x1xf32> to vector<8x8xf32>
    %343 = arith.subf %332, %342 : vector<8x8xf32>
    %c1_i32 = arith.constant 1 : i32
    %344 = vector.broadcast %c1_i32 : i32 to vector<8x8xi32>
    %345 = arith.addi %325, %344 : vector<8x8xi32>
    %c2_i32 = arith.constant 2 : i32
    %c0_i32 = arith.constant 0 : i32
    %346 = arith.cmpi eq, %c2_i32, %c0_i32 : i32
    %c1_i32_91 = arith.constant 1 : i32
    %347 = arith.select %346, %c1_i32_91, %c2_i32 : i32
    %348 = vector.broadcast %347 : i32 to vector<8x8xi32>
    %349 = arith.remsi %325, %348 : vector<8x8xi32>
    %c0_i32_92 = arith.constant 0 : i32
    %350 = vector.broadcast %c0_i32_92 : i32 to vector<8x8xi32>
    %351 = arith.cmpi ne, %349, %350 : vector<8x8xi32>
    %c0_i32_93 = arith.constant 0 : i32
    %352 = vector.broadcast %c0_i32_93 : i32 to vector<8x8xi32>
    %353 = arith.cmpi slt, %349, %352 : vector<8x8xi32>
    %c0_i32_94 = arith.constant 0 : i32
    %354 = arith.cmpi slt, %347, %c0_i32_94 : i32
    %355 = vector.broadcast %354 : i1 to vector<8x8xi1>
    %356 = vector.broadcast %355 : vector<8x8xi1> to vector<8x8xi1>
    %357 = arith.xori %353, %356 : vector<8x8xi1>
    %358 = arith.andi %357, %351 : vector<8x8xi1>
    %359 = vector.broadcast %347 : i32 to vector<8x8xi32>
    %360 = arith.addi %349, %359 : vector<8x8xi32>
    %361 = arith.select %358, %360, %349 : vector<8x8xi1>, vector<8x8xi32>
    %c2_i32_95 = arith.constant 2 : i32
    %362 = vector.broadcast %c2_i32_95 : i32 to vector<8x8xi32>
    %363 = arith.muli %362, %361 : vector<8x8xi32>
    %364 = arith.subi %345, %363 : vector<8x8xi32>
    %365 = arith.cmpi eq, %326, %364 : vector<8x8xi32>
    %366 = arith.extui %365 : vector<8x8xi1> to vector<8x8xi32>
    %367 = arith.sitofp %366 : vector<8x8xi32> to vector<8x8xf32>
    %368 = arith.mulf %367, %343 : vector<8x8xf32>
    %cst_96 = arith.constant dense<0.000000e+00> : vector<8xf32>
    %369 = vector.multi_reduction <add>, %368, %cst_96 [1] : vector<8x8xf32> to vector<8xf32>
    %370 = vector.shape_cast %369 : vector<8xf32> to vector<8x1xf32>
    %cst_97 = arith.constant dense<0.000000e+00> : vector<1xf32>
    %371 = vector.multi_reduction <add>, %370, %cst_97 [0] : vector<8x1xf32> to vector<1xf32>
    %372 = vector.shape_cast %371 : vector<1xf32> to vector<1x1xf32>
    %cst_98 = arith.constant 0.000000e+00 : f32
    %373 = vector.broadcast %cst_98 : f32 to vector<1x1xf32>
    %374 = arith.subf %373, %372 : vector<1x1xf32>
    %cst_99 = arith.constant 8.000000e+00 : f32
    %375 = vector.broadcast %cst_99 : f32 to vector<1x1xf32>
    %376 = arith.divf %374, %375 : vector<1x1xf32>
    %c0_100 = arith.constant 0 : index
    %c0_101 = arith.constant 0 : index
    %377 = vector.load %arg4[%c0_100, %c0_101] : memref<1x1xf32, #tpu.memory_space<vmem>>, vector<1x1xf32>
    tpu.vector_store %arg4[%c0_100, %c0_101], %376 {strides = array<i32>} : memref<1x1xf32, #tpu.memory_space<vmem>>, vector<1x1xf32>,
    return
  }
}

</mosaic_0001>

<llo_original>
// kernel: path_encoder_forward.1
$region0: #{path_encoder_forward.1}
  #allocation0 [shape = 'u32[]', space=smem, size = 0x4, offset = 0x4, fixed_abs, tag = 'smem constant byte address 0x4 - core index']
  #allocation1 [shape = 'u32[144,128]{1,0:T(1,128)}', space=vmem, size = 0x12000, scoped, tag = 'internal scratch']
  %s0 = inlined_call_operand.vmem [shape: s32[64,1], index: 0, kind: input, shape index: {}]
  %s1 = inlined_call_operand.vmem [shape: bf16[16,32], index: 1, kind: input, shape index: {}]
  %s2 = inlined_call_operand.vmem [shape: bf16[32,416], index: 2, kind: input, shape index: {}]
  %s3 = inlined_call_operand.vmem [shape: f32[1,256], index: 3, kind: input, shape index: {}]
  %s4 = inlined_call_operand.hbm [shape: f32[1,1], index: 4, kind: output, shape index: {0}]
  %s5 = inlined_call_operand.hbm [shape: f32[8,32], index: 5, kind: output, shape index: {1}]
  %6 = xla_tuple %s4, %s5
  %s7 = sld [smem:[#allocation0]]
  $region34: #{path_encoder_forward.1} parent=0
    _
  %s9 = ssub.s32 1, %s7
  %s10 = scalar_select 0, %s9, %s7
  $region1: #{path_encoder_forward.1} parent=0
    #allocation2 [shape = 'u8[512]{0}', space=vmem, size = 0x400, scoped, tag = 'output window, operand 0, single buffered']
    #allocation3 [shape = 's32[1]{0}', space=sflag, size = 0x4, scoped, tag = 'scoped memory for path_encoder_forward.1']
    #allocation4 [shape = 'u8[4096]{0}', space=vmem, size = 0x1000, scoped, tag = 'output window, operand 1, single buffered']
    #allocation5 [shape = 's32[1]{0}', space=sflag, size = 0x4, scoped, tag = 'scoped memory for path_encoder_forward.1']
    %11 = vsyncpa [#allocation3], 0
    %12 = vsyncpa [#allocation5], 0
    // Predicated region
    $region2: #{path_encoder_forward.1} parent=1 // pred_check
      _
    $region3: #{path_encoder_forward.1} parent=1 // pred_check_branch
      %14 = sbr.rel (0) target = $region5
    $region4: #{path_encoder_forward.1} parent=1 // pred_region
      _
    $region5: #{path_encoder_forward.1} parent=1 // pred_fallthru
      _
    // Predicated region
    $region6: #{path_encoder_forward.1} parent=1 // pred_check
      _
    $region7: #{path_encoder_forward.1} parent=1 // pred_check_branch
      %16 = sbr.rel (0) target = $region9
    $region8: #{path_encoder_forward.1} parent=1 // pred_region
      _
    $region9: #{path_encoder_forward.1} parent=1 // pred_fallthru
      _
    // Predicated region
    $region10: #{path_encoder_forward.1} parent=1 // pred_check
      _
    $region11: #{path_encoder_forward.1} parent=1 // pred_check_branch
      %18 = sbr.rel (0) target = $region13
    $region12: #{path_encoder_forward.1} parent=1 // pred_region
      _
    $region13: #{path_encoder_forward.1} parent=1 // pred_fallthru
      _
    // Predicated region
    $region14: #{path_encoder_forward.1} parent=1 // pred_check
      _
    $region15: #{path_encoder_forward.1} parent=1 // pred_check_branch
      %20 = sbr.rel (0) target = $region17
    $region16: #{path_encoder_forward.1} parent=1 // pred_region
      _
    $region17: #{path_encoder_forward.1} parent=1 // pred_fallthru
      _
    %v22 = vld [vmem:[%s2] sm:$0xf]
    %v23 = vld [vmem:[%s2 + $0x10] sm:$0xf]
    %v24 = vld [vmem:[%s2 + $0x20] sm:$0xf]
    %v25 = vld [vmem:[%s2 + $0x30] sm:$0xf]
    %v26 = vld [vmem:[%s2 + $0x4] sm:$0xf]
    %v27 = vld [vmem:[%s2 + $0x14] sm:$0xf]
    %v28 = vld [vmem:[%s2 + $0x24] sm:$0xf]
    %v29 = vld [vmem:[%s2 + $0x34] sm:$0xf]
    %v30 = vld [vmem:[%s2 + $0x8] sm:$0xf]
    %v31 = vld [vmem:[%s2 + $0x18] sm:$0xf]
    %v32 = vld [vmem:[%s2 + $0x28] sm:$0xf]
    %v33 = vld [vmem:[%s2 + $0x38] sm:$0xf]
    %v34 = vld [vmem:[%s2 + $0xc] sm:$0xf]
    %v35 = vld [vmem:[%s2 + $0x1c] sm:$0xf]
    %v36 = vld [vmem:[%s2 + $0x2c] sm:$0xf]
    %v37 = vld [vmem:[%s2 + $0x3c] sm:$0xf]
    %v38 = vld [vmem:[%s3] sm:$0x1]
    %v39 = vld [vmem:[%s3 + $0x1] sm:$0x1]
    %v40 = vld [vmem:[%s0] sm:$0xff]
    %v41 = vld [vmem:[%s0 + $0x8] sm:$0xff]
    %v42 = vld [vmem:[%s0 + $0x10] sm:$0xff]
    %v43 = vld [vmem:[%s0 + $0x18] sm:$0xff]
    %v44 = vld [vmem:[%s0 + $0x20] sm:$0xff]
    %v45 = vld [vmem:[%s0 + $0x28] sm:$0xff]
    %v46 = vld [vmem:[%s0 + $0x30] sm:$0xff]
    %v47 = vld [vmem:[%s0 + $0x38] sm:$0xff]
    %v48 = vlaneseq
    %v49 = vand.u32 %v48, 127
    %50 = vset.pattern.permute.xlu0 0
    %51 = vperm.xlu0 %50, %v40
    %v52 = vpop.permute.xlu0 %51
    %53 = vset.pattern.permute.xlu0 0
    %54 = vperm.xlu0 %53, %v41
    %v55 = vpop.permute.xlu0 %54
    %56 = vset.pattern.permute.xlu0 0
    %57 = vperm.xlu0 %56, %v42
    %v58 = vpop.permute.xlu0 %57
    %59 = vset.pattern.permute.xlu0 0
    %60 = vperm.xlu0 %59, %v43
    %v61 = vpop.permute.xlu0 %60
    %62 = vset.pattern.permute.xlu0 0
    %63 = vperm.xlu0 %62, %v44
    %v64 = vpop.permute.xlu0 %63
    %65 = vset.pattern.permute.xlu0 0
    %66 = vperm.xlu0 %65, %v45
    %v67 = vpop.permute.xlu0 %66
    %68 = vset.pattern.permute.xlu0 0
    %69 = vperm.xlu0 %68, %v46
    %v70 = vpop.permute.xlu0 %69
    %71 = vset.pattern.permute.xlu0 0
    %72 = vperm.xlu0 %71, %v47
    %v73 = vpop.permute.xlu0 %72
    %vm74 = vcmp.eq.s32.totalorder %v52, %v49
    %vm75 = vcmp.eq.s32.totalorder %v55, %v49
    %vm76 = vcmp.eq.s32.totalorder %v58, %v49
    %vm77 = vcmp.eq.s32.totalorder %v61, %v49
    %vm78 = vcmp.eq.s32.totalorder %v64, %v49
    %vm79 = vcmp.eq.s32.totalorder %v67, %v49
    %vm80 = vcmp.eq.s32.totalorder %v70, %v49
    %vm81 = vcmp.eq.s32.totalorder %v73, %v49
    %v82 = vsel %vm74, 1, 0
    %v83 = vsel %vm75, 1, 0
    %v84 = vsel %vm76, 1, 0
    %v85 = vsel %vm77, 1, 0
    %v86 = vsel %vm78, 1, 0
    %v87 = vsel %vm79, 1, 0
    %v88 = vsel %vm80, 1, 0
    %v89 = vsel %vm81, 1, 0
    %v90 = vcvt.s32.f32 %v82
    %v91 = vcvt.s32.f32 %v83
    %v92 = vcvt.s32.f32 %v84
    %v93 = vcvt.s32.f32 %v85
    %v94 = vcvt.s32.f32 %v86
    %v95 = vcvt.s32.f32 %v87
    %v96 = vcvt.s32.f32 %v88
    %v97 = vcvt.s32.f32 %v89
    %v98 = vpack.c.bf16 %v91, %v90
    %v99 = vpack.c.bf16 %v93, %v92
    %v100 = vpack.c.bf16 %v95, %v94
    %v101 = vpack.c.bf16 %v97, %v96
    %v102 = vld [vmem:[%s1] sm:$0xf]
    %v103 = vld [vmem:[%s1 + $0x4] sm:$0xf]
    %v106 = vunpack.c.l.b16 %v102
    %v107 = vunpack.c.l.b16 %v103
    %v108 = vpack.c.b16 %v107, %v106
    %v113 = vunpack.c.l.b16 %v22
    %v114 = vunpack.c.l.b16 %v23
    %v115 = vunpack.c.l.b16 %v24
    %v116 = vunpack.c.l.b16 %v25
    %v117 = vpack.c.b16 %v114, %v113
    %v118 = vpack.c.b16 %v116, %v115
    %vm121 = vcmask 261120
    %v123 = vsel %vm121, %v108, 0
    %125 = vmatprep.subr.bf16.mxu0 0
    %126 = vmatpush1.bf16.msra.mxu0 %v117
    %127 = vmatprep.subr.bf16.mxu0 0
    %128 = vmatpush1.bf16.msra.mxu0 %v118
    %129 = vmatprep.subr.bf16.mxu0 0
    %130 = vmatpush1.bf16.msra.mxu0 0
    %131 = vmatprep.subr.bf16.mxu0 0
    %132 = vmatpush1.bf16.msra.mxu0 0
    %133 = vmatprep.subr.bf16.mxu0 0
    %134 = vmatpush1.bf16.msra.mxu0 0
    %135 = vmatprep.subr.bf16.mxu0 0
    %136 = vmatpush1.bf16.msra.mxu0 0
    %137 = vmatprep.subr.bf16.mxu0 0
    %138 = vmatpush1.bf16.msra.mxu0 0
    %139 = vmatprep.subr.bf16.mxu0 0
    %140 = vmatpush1.bf16.msra.mxu0 0
    %141 = vmatprep.subr.bf16.mxu0 0
    %142 = vmatpush1.bf16.msra.mxu0 0
    %143 = vmatprep.subr.bf16.mxu0 0
    %144 = vmatpush1.bf16.msra.mxu0 0
    %145 = vmatprep.subr.bf16.mxu0 0
    %146 = vmatpush1.bf16.msra.mxu0 0
    %147 = vmatprep.subr.bf16.mxu0 0
    %148 = vmatpush1.bf16.msra.mxu0 0
    %149 = vmatprep.subr.bf16.mxu0 0
    %150 = vmatpush1.bf16.msra.mxu0 0
    %151 = vmatprep.subr.bf16.mxu0 0
    %152 = vmatpush1.bf16.msra.mxu0 0
    %153 = vmatprep.subr.bf16.mxu0 0
    %154 = vmatpush1.bf16.msra.mxu0 0
    %155 = vmatprep.subr.bf16.mxu0 0
    %156 = vmatpush1.bf16.msra.mxu0 0
    %157 = vmatprep.mubr.bf16.mxu0 0
    %158 = vmatmul.mubr.bf16.gmra.mrb[0].mxu0 %v123
    %v159 = vpop.f32.mrb[0].mxu0
    %v160 = vadd.f32 0.0, %v159
    %v161 = vpop.f32.mrb[0].mxu0
    %v162 = vpop.f32.mrb[0].mxu0
    %v163 = vadd.f32 0.0, %v162
    %v164 = vpop.f32.mrb[0].mxu0
    %165 = vdwg.mxu0
    %v166 = vpack.c.bf16 %v163, %v160
    %v168 = vlaneseq
    %v169 = vshrl.u32 %v168, 7
    %v170 = vsub.s32 0, %v169
    %v171 = vrot.slane %v38, %v170
    %vm173 = vcmask 130048
    %v175 = vsel %vm173, %v98, 0
    %v178 = vsel %vm173, %v99, 0
    %v181 = vsel %vm173, %v100, 0
    %v184 = vsel %vm173, %v101, 0
    %186 = vmatprep.subr.bf16.mxu0 0
    %187 = vmatpush1.bf16.msra.mxu0 %v166
    %188 = vmatprep.subr.bf16.mxu0 0
    %189 = vmatpush1.bf16.msra.mxu0 0
    %190 = vmatprep.subr.bf16.mxu0 0
    %191 = vmatpush1.bf16.msra.mxu0 0
    %192 = vmatprep.subr.bf16.mxu0 0
    %193 = vmatpush1.bf16.msra.mxu0 0
    %194 = vmatprep.subr.bf16.mxu0 0
    %195 = vmatpush1.bf16.msra.mxu0 0
    %196 = vmatprep.subr.bf16.mxu0 0
    %197 = vmatpush1.bf16.msra.mxu0 0
    %198 = vmatprep.subr.bf16.mxu0 0
    %199 = vmatpush1.bf16.msra.mxu0 0
    %200 = vmatprep.subr.bf16.mxu0 0
    %201 = vmatpush1.bf16.msra.mxu0 0
    %202 = vmatprep.subr.bf16.mxu0 0
    %203 = vmatpush1.bf16.msra.mxu0 0
    %204 = vmatprep.subr.bf16.mxu0 0
    %205 = vmatpush1.bf16.msra.mxu0 0
    %206 = vmatprep.subr.bf16.mxu0 0
    %207 = vmatpush1.bf16.msra.mxu0 0
    %208 = vmatprep.subr.bf16.mxu0 0
    %209 = vmatpush1.bf16.msra.mxu0 0
    %210 = vmatprep.subr.bf16.mxu0 0
    %211 = vmatpush1.bf16.msra.mxu0 0
    %212 = vmatprep.subr.bf16.mxu0 0
    %213 = vmatpush1.bf16.msra.mxu0 0
    %214 = vmatprep.subr.bf16.mxu0 0
    %215 = vmatpush1.bf16.msra.mxu0 0
    %216 = vmatprep.subr.bf16.mxu0 0
    %217 = vmatpush1.bf16.msra.mxu0 0
    %218 = vmatprep.mubr.bf16.mxu0 0
    %219 = vmatmul.mubr.bf16.gmra.mrb[0].mxu0 %v175
    %v220 = vpop.f32.mrb[0].mxu0
    %v221 = vadd.f32 %v171, %v220
    %v222 = vpop.f32.mrb[0].mxu0
    %v223 = vpop.f32.mrb[0].mxu0
    %v224 = vadd.f32 %v171, %v223
    %v225 = vpop.f32.mrb[0].mxu0
    %226 = vmatprep.mubr.bf16.mxu0 0
    %227 = vmatmul.mubr.bf16.gmra.mrb[0].mxu0 %v178
    %v228 = vpop.f32.mrb[0].mxu0
    %v229 = vadd.f32 %v171, %v228
    %v230 = vpop.f32.mrb[0].mxu0
    %v231 = vpop.f32.mrb[0].mxu0
    %v232 = vadd.f32 %v171, %v231
    %v233 = vpop.f32.mrb[0].mxu0
    %234 = vmatprep.mubr.bf16.mxu0 0
    %235 = vmatmul.mubr.bf16.gmra.mrb[0].mxu0 %v181
    %v236 = vpop.f32.mrb[0].mxu0
    %v237 = vadd.f32 %v171, %v236
    %v238 = vpop.f32.mrb[0].mxu0
    %v239 = vpop.f32.mrb[0].mxu0
    %v240 = vadd.f32 %v171, %v239
    %v241 = vpop.f32.mrb[0].mxu0
    %242 = vmatprep.mubr.bf16.mxu0 0
    %243 = vmatmul.mubr.bf16.gmra.mrb[0].mxu0 %v184
    %v244 = vpop.f32.mrb[0].mxu0
    %v245 = vadd.f32 %v171, %v244
    %v246 = vpop.f32.mrb[0].mxu0
    %v247 = vpop.f32.mrb[0].mxu0
    %v248 = vadd.f32 %v171, %v247
    %v249 = vpop.f32.mrb[0].mxu0
    %250 = vdwg.mxu0
    %v255 = vunpack.c.l.b16 %v26
    %v256 = vunpack.c.l.b16 %v27
    %v257 = vunpack.c.l.b16 %v28
    %v258 = vunpack.c.l.b16 %v29
    %v259 = vpack.c.b16 %v256, %v255
    %v260 = vpack.c.b16 %v258, %v257
    %v264 = vsel %vm121, 0, 0
    %266 = vmatprep.subr.bf16.mxu0 0
    %267 = vmatpush1.bf16.msra.mxu0 %v259
    %268 = vmatprep.subr.bf16.mxu0 0
    %269 = vmatpush1.bf16.msra.mxu0 %v260
    %270 = vmatprep.subr.bf16.mxu0 0
    %271 = vmatpush1.bf16.msra.mxu0 0
    %272 = vmatprep.subr.bf16.mxu0 0
    %273 = vmatpush1.bf16.msra.mxu0 0
    %274 = vmatprep.subr.bf16.mxu0 0
    %275 = vmatpush1.bf16.msra.mxu0 0
    %276 = vmatprep.subr.bf16.mxu0 0
    %277 = vmatpush1.bf16.msra.mxu0 0
    %278 = vmatprep.subr.bf16.mxu0 0
    %279 = vmatpush1.bf16.msra.mxu0 0
    %280 = vmatprep.subr.bf16.mxu0 0
    %281 = vmatpush1.bf16.msra.mxu0 0
    %282 = vmatprep.subr.bf16.mxu0 0
    %283 = vmatpush1.bf16.msra.mxu0 0
    %284 = vmatprep.subr.bf16.mxu0 0
    %285 = vmatpush1.bf16.msra.mxu0 0
    %286 = vmatprep.subr.bf16.mxu0 0
    %287 = vmatpush1.bf16.msra.mxu0 0
    %288 = vmatprep.subr.bf16.mxu0 0
    %289 = vmatpush1.bf16.msra.mxu0 0
    %290 = vmatprep.subr.bf16.mxu0 0
    %291 = vmatpush1.bf16.msra.mxu0 0
    %292 = vmatprep.subr.bf16.mxu0 0
    %293 = vmatpush1.bf16.msra.mxu0 0
    %294 = vmatprep.subr.bf16.mxu0 0
    %295 = vmatpush1.bf16.msra.mxu0 0
    %296 = vmatprep.subr.bf16.mxu0 0
    %297 = vmatpush1.bf16.msra.mxu0 0
    %298 = vmatprep.mubr.bf16.mxu0 0
    %299 = vmatmul.mubr.bf16.gmra.mrb[0].mxu0 %v264
    %v300 = vpop.f32.mrb[0].mxu0
    %v301 = vadd.f32 0.0, %v300
    %v302 = vpop.f32.mrb[0].mxu0
    %v303 = vpop.f32.mrb[0].mxu0
    %v304 = vpop.f32.mrb[0].mxu0
    %305 = vdwg.mxu0
    %v306 = vadd.f32 %v221, %v301
    %v307 = vxor.u32 %v306, 2147483648
    %v308 = vmul.f32 %v307, 1.442695
    %v309 = vpow.pop %v308
    %v310 = vadd.f32 %v309, 1.0
    %v311 = vrcp.pop %v310
    %v312 = vmul.f32 1.0, %v311
    %v313 = vtanh.pop %v306
    %v314 = vmul.f32 %v312, 0.0
    %316 = vrot.lane.b32.xlu0 %v313, 64
    %v317 = vpop.permute.xlu0 %316
    %v319 = vmul.f32 %v312, %v317
    %321 = vrot.lane.b32.xlu0 %v319, 32
    %v322 = vpop.permute.xlu0 %321
    %v324 = vadd.f32 %v314, %v322
    %v325 = vtanh.pop %v324
    %327 = vrot.lane.b32.xlu0 %v325, 64
    %v328 = vpop.permute.xlu0 %327
    %v330 = vmul.f32 %v312, %v328
    %v331 = vpack.c.bf16 %v330, %v330
    %333 = vrot.lane.b32.xlu0 %v331, 32
    %v334 = vpop.permute.xlu0 %333
    %v336 = vsel %vm121, %v334, 0
    %338 = vmatprep.subr.bf16.mxu0 0
    %339 = vmatpush1.bf16.msra.mxu0 %v259
    %340 = vmatprep.subr.bf16.mxu0 0
    %341 = vmatpush1.bf16.msra.mxu0 %v260
    %342 = vmatprep.subr.bf16.mxu0 0
    %343 = vmatpush1.bf16.msra.mxu0 0
    %344 = vmatprep.subr.bf16.mxu0 0
    %345 = vmatpush1.bf16.msra.mxu0 0
    %346 = vmatprep.subr.bf16.mxu0 0
    %347 = vmatpush1.bf16.msra.mxu0 0
    %348 = vmatprep.subr.bf16.mxu0 0
    %349 = vmatpush1.bf16.msra.mxu0 0
    %350 = vmatprep.subr.bf16.mxu0 0
    %351 = vmatpush1.bf16.msra.mxu0 0
    %352 = vmatprep.subr.bf16.mxu0 0
    %353 = vmatpush1.bf16.msra.mxu0 0
    %354 = vmatprep.subr.bf16.mxu0 0
    %355 = vmatpush1.bf16.msra.mxu0 0
    %356 = vmatprep.subr.bf16.mxu0 0
    %357 = vmatpush1.bf16.msra.mxu0 0
    %358 = vmatprep.subr.bf16.mxu0 0
    %359 = vmatpush1.bf16.msra.mxu0 0
    %360 = vmatprep.subr.bf16.mxu0 0
    %361 = vmatpush1.bf16.msra.mxu0 0
    %362 = vmatprep.subr.bf16.mxu0 0
    %363 = vmatpush1.bf16.msra.mxu0 0
    %364 = vmatprep.subr.bf16.mxu0 0
    %365 = vmatpush1.bf16.msra.mxu0 0
    %366 = vmatprep.subr.bf16.mxu0 0
    %367 = vmatpush1.bf16.msra.mxu0 0
    %368 = vmatprep.subr.bf16.mxu0 0
    %369 = vmatpush1.bf16.msra.mxu0 0
    %370 = vmatprep.mubr.bf16.mxu0 0
    %371 = vmatmul.mubr.bf16.gmra.mrb[0].mxu0 %v336
    %v372 = vpop.f32.mrb[0].mxu0
    %v373 = vadd.f32 0.0, %v372
    %v374 = vpop.f32.mrb[0].mxu0
    %v375 = vpop.f32.mrb[0].mxu0
    %v376 = vpop.f32.mrb[0].mxu0
    %377 = vdwg.mxu0
    %v378 = vadd.f32 %v224, %v373
    %v379 = vxor.u32 %v378, 2147483648
    %v380 = vmul.f32 %v379, 1.442695
    %v381 = vpow.pop %v380
    %v382 = vadd.f32 %v381, 1.0
    %v383 = vrcp.pop %v382
    %v384 = vmul.f32 1.0, %v383
    %v385 = vtanh.pop %v378
    %v386 = vmul.f32 %v384, %v324
    %388 = vrot.lane.b32.xlu0 %v385, 64
    %v389 = vpop.permute.xlu0 %388
    %v391 = vmul.f32 %v384, %v389
    %393 = vrot.lane.b32.xlu0 %v391, 32
    %v394 = vpop.permute.xlu0 %393
    %v396 = vadd.f32 %v386, %v394
    %v397 = vtanh.pop %v396
    %399 = vrot.lane.b32.xlu0 %v397, 64
    %v400 = vpop.permute.xlu0 %399
    %v402 = vmul.f32 %v384, %v400
    %v403 = vpack.c.bf16 %v402, %v402
    %405 = vrot.lane.b32.xlu0 %v403, 32
    %v406 = vpop.permute.xlu0 %405
    %v408 = vsel %vm121, %v406, 0
    %410 = vmatprep.subr.bf16.mxu0 0
    %411 = vmatpush1.bf16.msra.mxu0 %v259
    %412 = vmatprep.subr.bf16.mxu0 0
    %413 = vmatpush1.bf16.msra.mxu0 %v260
    %414 = vmatprep.subr.bf16.mxu0 0
    %415 = vmatpush1.bf16.msra.mxu0 0
    %416 = vmatprep.subr.bf16.mxu0 0
    %417 = vmatpush1.bf16.msra.mxu0 0
    %418 = vmatprep.subr.bf16.mxu0 0
    %419 = vmatpush1.bf16.msra.mxu0 0
    %420 = vmatprep.subr.bf16.mxu0 0
    %421 = vmatpush1.bf16.msra.mxu0 0
    %422 = vmatprep.subr.bf16.mxu0 0
    %423 = vmatpush1.bf16.msra.mxu0 0
    %424 = vmatprep.subr.bf16.mxu0 0
    %425 = vmatpush1.bf16.msra.mxu0 0
    %426 = vmatprep.subr.bf16.mxu0 0
    %427 = vmatpush1.bf16.msra.mxu0 0
    %428 = vmatprep.subr.bf16.mxu0 0
    %429 = vmatpush1.bf16.msra.mxu0 0
    %430 = vmatprep.subr.bf16.mxu0 0
    %431 = vmatpush1.bf16.msra.mxu0 0
    %432 = vmatprep.subr.bf16.mxu0 0
    %433 = vmatpush1.bf16.msra.mxu0 0
    %434 = vmatprep.subr.bf16.mxu0 0
    %435 = vmatpush1.bf16.msra.mxu0 0
    %436 = vmatprep.subr.bf16.mxu0 0
    %437 = vmatpush1.bf16.msra.mxu0 0
    %438 = vmatprep.subr.bf16.mxu0 0
    %439 = vmatpush1.bf16.msra.mxu0 0
    %440 = vmatprep.subr.bf16.mxu0 0
    %441 = vmatpush1.bf16.msra.mxu0 0
    %442 = vmatprep.mubr.bf16.mxu0 0
    %443 = vmatmul.mubr.bf16.gmra.mrb[0].mxu0 %v408
    %v444 = vpop.f32.mrb[0].mxu0
    %v445 = vadd.f32 0.0, %v444
    %v446 = vpop.f32.mrb[0].mxu0
    %v447 = vpop.f32.mrb[0].mxu0
    %v448 = vpop.f32.mrb[0].mxu0
    %449 = vdwg.mxu0
    %v450 = vadd.f32 %v229, %v445
    %v451 = vxor.u32 %v450, 2147483648
    %v452 = vmul.f32 %v451, 1.442695
    %v453 = vpow.pop %v452
    %v454 = vadd.f32 %v453, 1.0
    %v455 = vrcp.pop %v454
    %v456 = vmul.f32 1.0, %v455
    %v457 = vtanh.pop %v450
    %v458 = vmul.f32 %v456, %v396
    %460 = vrot.lane.b32.xlu0 %v457, 64
    %v461 = vpop.permute.xlu0 %460
    %v463 = vmul.f32 %v456, %v461
    %465 = vrot.lane.b32.xlu0 %v463, 32
    %v466 = vpop.permute.xlu0 %465
    %v468 = vadd.f32 %v458, %v466
    %v469 = vtanh.pop %v468
    %471 = vrot.lane.b32.xlu0 %v469, 64
    %v472 = vpop.permute.xlu0 %471
    %v474 = vmul.f32 %v456, %v472
    %v475 = vpack.c.bf16 %v474, %v474
    %477 = vrot.lane.b32.xlu0 %v475, 32
    %v478 = vpop.permute.xlu0 %477
    %v480 = vsel %vm121, %v478, 0
    %482 = vmatprep.subr.bf16.mxu0 0
    %483 = vmatpush1.bf16.msra.mxu0 %v259
    %484 = vmatprep.subr.bf16.mxu0 0
    %485 = vmatpush1.bf16.msra.mxu0 %v260
    %486 = vmatprep.subr.bf16.mxu0 0
    %487 = vmatpush1.bf16.msra.mxu0 0
    %488 = vmatprep.subr.bf16.mxu0 0
    %489 = vmatpush1.bf16.msra.mxu0 0
    %490 = vmatprep.subr.bf16.mxu0 0
    %491 = vmatpush1.bf16.msra.mxu0 0
    %492 = vmatprep.subr.bf16.mxu0 0
    %493 = vmatpush1.bf16.msra.mxu0 0
    %494 = vmatprep.subr.bf16.mxu0 0
    %495 = vmatpush1.bf16.msra.mxu0 0
    %496 = vmatprep.subr.bf16.mxu0 0
    %497 = vmatpush1.bf16.msra.mxu0 0
    %498 = vmatprep.subr.bf16.mxu0 0
    %499 = vmatpush1.bf16.msra.mxu0 0
    %500 = vmatprep.subr.bf16.mxu0 0
    %501 = vmatpush1.bf16.msra.mxu0 0
    %502 = vmatprep.subr.bf16.mxu0 0
    %503 = vmatpush1.bf16.msra.mxu0 0
    %504 = vmatprep.subr.bf16.mxu0 0
    %505 = vmatpush1.bf16.msra.mxu0 0
    %506 = vmatprep.subr.bf16.mxu0 0
    %507 = vmatpush1.bf16.msra.mxu0 0
    %508 = vmatprep.subr.bf16.mxu0 0
    %509 = vmatpush1.bf16.msra.mxu0 0
    %510 = vmatprep.subr.bf16.mxu0 0
    %511 = vmatpush1.bf16.msra.mxu0 0
    %512 = vmatprep.subr.bf16.mxu0 0
    %513 = vmatpush1.bf16.msra.mxu0 0
    %514 = vmatprep.mubr.bf16.mxu0 0
    %515 = vmatmul.mubr.bf16.gmra.mrb[0].mxu0 %v480
    %v516 = vpop.f32.mrb[0].mxu0
    %v517 = vadd.f32 0.0, %v516
    %v518 = vpop.f32.mrb[0].mxu0
    %v519 = vpop.f32.mrb[0].mxu0
    %v520 = vpop.f32.mrb[0].mxu0
    %521 = vdwg.mxu0
    %v522 = vadd.f32 %v232, %v517
    %v523 = vxor.u32 %v522, 2147483648
    %v524 = vmul.f32 %v523, 1.442695
    %v525 = vpow.pop %v524
    %v526 = vadd.f32 %v525, 1.0
    %v527 = vrcp.pop %v526
    %v528 = vmul.f32 1.0, %v527
    %v529 = vtanh.pop %v522
    %v530 = vmul.f32 %v528, %v468
    %532 = vrot.lane.b32.xlu0 %v529, 64
    %v533 = vpop.permute.xlu0 %532
    %v535 = vmul.f32 %v528, %v533
    %537 = vrot.lane.b32.xlu0 %v535, 32
    %v538 = vpop.permute.xlu0 %537
    %v540 = vadd.f32 %v530, %v538
    %v541 = vtanh.pop %v540
    %543 = vrot.lane.b32.xlu0 %v541, 64
    %v544 = vpop.permute.xlu0 %543
    %v546 = vmul.f32 %v528, %v544
    %v547 = vpack.c.bf16 %v546, %v546
    %549 = vrot.lane.b32.xlu0 %v547, 32
    %v550 = vpop.permute.xlu0 %549
    %v552 = vsel %vm121, %v550, 0
    %554 = vmatprep.subr.bf16.mxu0 0
    %555 = vmatpush1.bf16.msra.mxu0 %v259
    %556 = vmatprep.subr.bf16.mxu0 0
    %557 = vmatpush1.bf16.msra.mxu0 %v260
    %558 = vmatprep.subr.bf16.mxu0 0
    %559 = vmatpush1.bf16.msra.mxu0 0
    %560 = vmatprep.subr.bf16.mxu0 0
    %561 = vmatpush1.bf16.msra.mxu0 0
    %562 = vmatprep.subr.bf16.mxu0 0
    %563 = vmatpush1.bf16.msra.mxu0 0
    %564 = vmatprep.subr.bf16.mxu0 0
    %565 = vmatpush1.bf16.msra.mxu0 0
    %566 = vmatprep.subr.bf16.mxu0 0
    %567 = vmatpush1.bf16.msra.mxu0 0
    %568 = vmatprep.subr.bf16.mxu0 0
    %569 = vmatpush1.bf16.msra.mxu0 0
    %570 = vmatprep.subr.bf16.mxu0 0
    %571 = vmatpush1.bf16.msra.mxu0 0
    %572 = vmatprep.subr.bf16.mxu0 0
    %573 = vmatpush1.bf16.msra.mxu0 0
    %574 = vmatprep.subr.bf16.mxu0 0
    %575 = vmatpush1.bf16.msra.mxu0 0
    %576 = vmatprep.subr.bf16.mxu0 0
    %577 = vmatpush1.bf16.msra.mxu0 0
    %578 = vmatprep.subr.bf16.mxu0 0
    %579 = vmatpush1.bf16.msra.mxu0 0
    %580 = vmatprep.subr.bf16.mxu0 0
    %581 = vmatpush1.bf16.msra.mxu0 0
    %582 = vmatprep.subr.bf16.mxu0 0
    %583 = vmatpush1.bf16.msra.mxu0 0
    %584 = vmatprep.subr.bf16.mxu0 0
    %585 = vmatpush1.bf16.msra.mxu0 0
    %586 = vmatprep.mubr.bf16.mxu0 0
    %587 = vmatmul.mubr.bf16.gmra.mrb[0].mxu0 %v552
    %v588 = vpop.f32.mrb[0].mxu0
    %v589 = vadd.f32 0.0, %v588
    %v590 = vpop.f32.mrb[0].mxu0
    %v591 = vpop.f32.mrb[0].mxu0
    %v592 = vpop.f32.mrb[0].mxu0
    %593 = vdwg.mxu0
    %v594 = vadd.f32 %v237, %v589
    %v595 = vxor.u32 %v594, 2147483648
    %v596 = vmul.f32 %v595, 1.442695
    %v597 = vpow.pop %v596
    %v598 = vadd.f32 %v597, 1.0
    %v599 = vrcp.pop %v598
    %v600 = vmul.f32 1.0, %v599
    %v601 = vtanh.pop %v594
    %v602 = vmul.f32 %v600, %v540
    %604 = vrot.lane.b32.xlu0 %v601, 64
    %v605 = vpop.permute.xlu0 %604
    %v607 = vmul.f32 %v600, %v605
    %609 = vrot.lane.b32.xlu0 %v607, 32
    %v610 = vpop.permute.xlu0 %609
    %v612 = vadd.f32 %v602, %v610
    %v613 = vtanh.pop %v612
    %615 = vrot.lane.b32.xlu0 %v613, 64
    %v616 = vpop.permute.xlu0 %615
    %v618 = vmul.f32 %v600, %v616
    %v619 = vpack.c.bf16 %v618, %v618
    %621 = vrot.lane.b32.xlu0 %v619, 32
    %v622 = vpop.permute.xlu0 %621
    %v624 = vsel %vm121, %v622, 0
    %626 = vmatprep.subr.bf16.mxu0 0
    %627 = vmatpush1.bf16.msra.mxu0 %v259
    %628 = vmatprep.subr.bf16.mxu0 0
    %629 = vmatpush1.bf16.msra.mxu0 %v260
    %630 = vmatprep.subr.bf16.mxu0 0
    %631 = vmatpush1.bf16.msra.mxu0 0
    %632 = vmatprep.subr.bf16.mxu0 0
    %633 = vmatpush1.bf16.msra.mxu0 0
    %634 = vmatprep.subr.bf16.mxu0 0
    %635 = vmatpush1.bf16.msra.mxu0 0
    %636 = vmatprep.subr.bf16.mxu0 0
    %637 = vmatpush1.bf16.msra.mxu0 0
    %638 = vmatprep.subr.bf16.mxu0 0
    %639 = vmatpush1.bf16.msra.mxu0 0
    %640 = vmatprep.subr.bf16.mxu0 0
    %641 = vmatpush1.bf16.msra.mxu0 0
    %642 = vmatprep.subr.bf16.mxu0 0
    %643 = vmatpush1.bf16.msra.mxu0 0
    %644 = vmatprep.subr.bf16.mxu0 0
    %645 = vmatpush1.bf16.msra.mxu0 0
    %646 = vmatprep.subr.bf16.mxu0 0
    %647 = vmatpush1.bf16.msra.mxu0 0
    %648 = vmatprep.subr.bf16.mxu0 0
    %649 = vmatpush1.bf16.msra.mxu0 0
    %650 = vmatprep.subr.bf16.mxu0 0
    %651 = vmatpush1.bf16.msra.mxu0 0
    %652 = vmatprep.subr.bf16.mxu0 0
    %653 = vmatpush1.bf16.msra.mxu0 0
    %654 = vmatprep.subr.bf16.mxu0 0
    %655 = vmatpush1.bf16.msra.mxu0 0
    %656 = vmatprep.subr.bf16.mxu0 0
    %657 = vmatpush1.bf16.msra.mxu0 0
    %658 = vmatprep.mubr.bf16.mxu0 0
    %659 = vmatmul.mubr.bf16.gmra.mrb[0].mxu0 %v624
    %v660 = vpop.f32.mrb[0].mxu0
    %v661 = vadd.f32 0.0, %v660
    %v662 = vpop.f32.mrb[0].mxu0
    %v663 = vpop.f32.mrb[0].mxu0
    %v664 = vpop.f32.mrb[0].mxu0
    %665 = vdwg.mxu0
    %v666 = vadd.f32 %v240, %v661
    %v667 = vxor.u32 %v666, 2147483648
    %v668 = vmul.f32 %v667, 1.442695
    %v669 = vpow.pop %v668
    %v670 = vadd.f32 %v669, 1.0
    %v671 = vrcp.pop %v670
    %v672 = vmul.f32 1.0, %v671
    %v673 = vtanh.pop %v666
    %v674 = vmul.f32 %v672, %v612
    %676 = vrot.lane.b32.xlu0 %v673, 64
    %v677 = vpop.permute.xlu0 %676
    %v679 = vmul.f32 %v672, %v677
    %681 = vrot.lane.b32.xlu0 %v679, 32
    %v682 = vpop.permute.xlu0 %681
    %v684 = vadd.f32 %v674, %v682
    %v685 = vtanh.pop %v684
    %687 = vrot.lane.b32.xlu0 %v685, 64
    %v688 = vpop.permute.xlu0 %687
    %v690 = vmul.f32 %v672, %v688
    %v691 = vpack.c.bf16 %v690, %v690
    %693 = vrot.lane.b32.xlu0 %v691, 32
    %v694 = vpop.permute.xlu0 %693
    %v696 = vsel %vm121, %v694, 0
    %698 = vmatprep.subr.bf16.mxu0 0
    %699 = vmatpush1.bf16.msra.mxu0 %v259
    %700 = vmatprep.subr.bf16.mxu0 0
    %701 = vmatpush1.bf16.msra.mxu0 %v260
    %702 = vmatprep.subr.bf16.mxu0 0
    %703 = vmatpush1.bf16.msra.mxu0 0
    %704 = vmatprep.subr.bf16.mxu0 0
    %705 = vmatpush1.bf16.msra.mxu0 0
    %706 = vmatprep.subr.bf16.mxu0 0
    %707 = vmatpush1.bf16.msra.mxu0 0
    %708 = vmatprep.subr.bf16.mxu0 0
    %709 = vmatpush1.bf16.msra.mxu0 0
    %710 = vmatprep.subr.bf16.mxu0 0
    %711 = vmatpush1.bf16.msra.mxu0 0
    %712 = vmatprep.subr.bf16.mxu0 0
    %713 = vmatpush1.bf16.msra.mxu0 0
    %714 = vmatprep.subr.bf16.mxu0 0
    %715 = vmatpush1.bf16.msra.mxu0 0
    %716 = vmatprep.subr.bf16.mxu0 0
    %717 = vmatpush1.bf16.msra.mxu0 0
    %718 = vmatprep.subr.bf16.mxu0 0
    %719 = vmatpush1.bf16.msra.mxu0 0
    %720 = vmatprep.subr.bf16.mxu0 0
    %721 = vmatpush1.bf16.msra.mxu0 0
    %722 = vmatprep.subr.bf16.mxu0 0
    %723 = vmatpush1.bf16.msra.mxu0 0
    %724 = vmatprep.subr.bf16.mxu0 0
    %725 = vmatpush1.bf16.msra.mxu0 0
    %726 = vmatprep.subr.bf16.mxu0 0
    %727 = vmatpush1.bf16.msra.mxu0 0
    %728 = vmatprep.subr.bf16.mxu0 0
    %729 = vmatpush1.bf16.msra.mxu0 0
    %730 = vmatprep.mubr.bf16.mxu0 0
    %731 = vmatmul.mubr.bf16.gmra.mrb[0].mxu0 %v696
    %v732 = vpop.f32.mrb[0].mxu0
    %v733 = vadd.f32 0.0, %v732
    %v734 = vpop.f32.mrb[0].mxu0
    %v735 = vpop.f32.mrb[0].mxu0
    %v736 = vpop.f32.mrb[0].mxu0
    %737 = vdwg.mxu0
    %v738 = vadd.f32 %v245, %v733
    %v739 = vxor.u32 %v738, 2147483648
    %v740 = vmul.f32 %v739, 1.442695
    %v741 = vpow.pop %v740
    %v742 = vadd.f32 %v741, 1.0
    %v743 = vrcp.pop %v742
    %v744 = vmul.f32 1.0, %v743
    %v745 = vtanh.pop %v738
    %v746 = vmul.f32 %v744, %v684
    %748 = vrot.lane.b32.xlu0 %v745, 64
    %v749 = vpop.permute.xlu0 %748
    %v751 = vmul.f32 %v744, %v749
    %753 = vrot.lane.b32.xlu0 %v751, 32
    %v754 = vpop.permute.xlu0 %753
    %v756 = vadd.f32 %v746, %v754
    %v757 = vtanh.pop %v756
    %759 = vrot.lane.b32.xlu0 %v757, 64
    %v760 = vpop.permute.xlu0 %759
    %v762 = vmul.f32 %v744, %v760
    %v763 = vpack.c.bf16 %v762, %v762
    %765 = vrot.lane.b32.xlu0 %v763, 32
    %v766 = vpop.permute.xlu0 %765
    %v768 = vsel %vm121, %v766, 0
    %770 = vmatprep.subr.bf16.mxu0 0
    %771 = vmatpush1.bf16.msra.mxu0 %v259
    %772 = vmatprep.subr.bf16.mxu0 0
    %773 = vmatpush1.bf16.msra.mxu0 %v260
    %774 = vmatprep.subr.bf16.mxu0 0
    %775 = vmatpush1.bf16.msra.mxu0 0
    %776 = vmatprep.subr.bf16.mxu0 0
    %777 = vmatpush1.bf16.msra.mxu0 0
    %778 = vmatprep.subr.bf16.mxu0 0
    %779 = vmatpush1.bf16.msra.mxu0 0
    %780 = vmatprep.subr.bf16.mxu0 0
    %781 = vmatpush1.bf16.msra.mxu0 0
    %782 = vmatprep.subr.bf16.mxu0 0
    %783 = vmatpush1.bf16.msra.mxu0 0
    %784 = vmatprep.subr.bf16.mxu0 0
    %785 = vmatpush1.bf16.msra.mxu0 0
    %786 = vmatprep.subr.bf16.mxu0 0
    %787 = vmatpush1.bf16.msra.mxu0 0
    %788 = vmatprep.subr.bf16.mxu0 0
    %789 = vmatpush1.bf16.msra.mxu0 0
    %790 = vmatprep.subr.bf16.mxu0 0
    %791 = vmatpush1.bf16.msra.mxu0 0
    %792 = vmatprep.subr.bf16.mxu0 0
    %793 = vmatpush1.bf16.msra.mxu0 0
    %794 = vmatprep.subr.bf16.mxu0 0
    %795 = vmatpush1.bf16.msra.mxu0 0
    %796 = vmatprep.subr.bf16.mxu0 0
    %797 = vmatpush1.bf16.msra.mxu0 0
    %798 = vmatprep.subr.bf16.mxu0 0
    %799 = vmatpush1.bf16.msra.mxu0 0
    %800 = vmatprep.subr.bf16.mxu0 0
    %801 = vmatpush1.bf16.msra.mxu0 0
    %802 = vmatprep.mubr.bf16.mxu0 0
    %803 = vmatmul.mubr.bf16.gmra.mrb[0].mxu0 %v768
    %v804 = vpop.f32.mrb[0].mxu0
    %v805 = vadd.f32 0.0, %v804
    %v806 = vpop.f32.mrb[0].mxu0
    %v807 = vpop.f32.mrb[0].mxu0
    %v808 = vpop.f32.mrb[0].mxu0
    %809 = vdwg.mxu0
    %v810 = vadd.f32 %v248, %v805
    %v811 = vxor.u32 %v810, 2147483648
    %v812 = vmul.f32 %v811, 1.442695
    %v813 = vpow.pop %v812
    %v814 = vadd.f32 %v813, 1.0
    %v815 = vrcp.pop %v814
    %v816 = vmul.f32 1.0, %v815
    %v817 = vtanh.pop %v810
    %v818 = vmul.f32 %v816, %v756
    %820 = vrot.lane.b32.xlu0 %v817, 64
    %v821 = vpop.permute.xlu0 %820
    %v823 = vmul.f32 %v816, %v821
    %825 = vrot.lane.b32.xlu0 %v823, 32
    %v826 = vpop.permute.xlu0 %825
    %v828 = vadd.f32 %v818, %v826
    %v829 = vtanh.pop %v828
    %831 = vrot.lane.b32.xlu0 %v829, 64
    %v832 = vpop.permute.xlu0 %831
    %v834 = vmul.f32 %v816, %v832
    %v835 = vpack.c.bf16 %v474, %v402
    %v836 = vpack.c.bf16 %v618, %v546
    %v837 = vpack.c.bf16 %v762, %v690
    %v838 = vpack.c.bf16 %v834, %v834
    %v840 = vlaneseq
    %v841 = vshrl.u32 %v840, 7
    %v842 = vsub.s32 0, %v841
    %v843 = vrot.slane %v39, %v842
    %849 = vrot.lane.b32.xlu0 %v835, 32
    %v850 = vpop.permute.xlu0 %849
    %851 = vrot.lane.b32.xlu0 %v836, 32
    %v852 = vpop.permute.xlu0 %851
    %853 = vrot.lane.b32.xlu0 %v837, 32
    %v854 = vpop.permute.xlu0 %853
    %855 = vrot.lane.b32.xlu0 %v838, 32
    %v856 = vpop.permute.xlu0 %855
    %v861 = vunpack.c.l.b16 %v30
    %v862 = vunpack.c.l.b16 %v31
    %v863 = vunpack.c.l.b16 %v32
    %v864 = vunpack.c.l.b16 %v33
    %v865 = vpack.c.b16 %v862, %v861
    %v866 = vpack.c.b16 %v864, %v863
    %867 = vrot.lane.b32.xlu0 %v865, 96
    %v868 = vpop.permute.xlu0 %867
    %869 = vrot.lane.b32.xlu0 %v866, 96
    %v870 = vpop.permute.xlu0 %869
    %v874 = vsel %vm121, %v850, 0
    %v877 = vsel %vm121, %v852, 0
    %v880 = vsel %vm121, %v854, 0
    %v883 = vsel %vm121, %v856, 0
    %885 = vmatprep.subr.bf16.mxu0 0
    %886 = vmatpush1.bf16.msra.mxu0 %v868
    %887 = vmatprep.subr.bf16.mxu0 0
    %888 = vmatpush1.bf16.msra.mxu0 %v870
    %889 = vmatprep.subr.bf16.mxu0 0
    %890 = vmatpush1.bf16.msra.mxu0 0
    %891 = vmatprep.subr.bf16.mxu0 0
    %892 = vmatpush1.bf16.msra.mxu0 0
    %893 = vmatprep.subr.bf16.mxu0 0
    %894 = vmatpush1.bf16.msra.mxu0 0
    %895 = vmatprep.subr.bf16.mxu0 0
    %896 = vmatpush1.bf16.msra.mxu0 0
    %897 = vmatprep.subr.bf16.mxu0 0
    %898 = vmatpush1.bf16.msra.mxu0 0
    %899 = vmatprep.subr.bf16.mxu0 0
    %900 = vmatpush1.bf16.msra.mxu0 0
    %901 = vmatprep.subr.bf16.mxu0 0
    %902 = vmatpush1.bf16.msra.mxu0 0
    %903 = vmatprep.subr.bf16.mxu0 0
    %904 = vmatpush1.bf16.msra.mxu0 0
    %905 = vmatprep.subr.bf16.mxu0 0
    %906 = vmatpush1.bf16.msra.mxu0 0
    %907 = vmatprep.subr.bf16.mxu0 0
    %908 = vmatpush1.bf16.msra.mxu0 0
    %909 = vmatprep.subr.bf16.mxu0 0
    %910 = vmatpush1.bf16.msra.mxu0 0
    %911 = vmatprep.subr.bf16.mxu0 0
    %912 = vmatpush1.bf16.msra.mxu0 0
    %913 = vmatprep.subr.bf16.mxu0 0
    %914 = vmatpush1.bf16.msra.mxu0 0
    %915 = vmatprep.subr.bf16.mxu0 0
    %916 = vmatpush1.bf16.msra.mxu0 0
    %917 = vmatprep.mubr.bf16.mxu0 0
    %918 = vmatmul.mubr.bf16.gmra.mrb[0].mxu0 %v874
    %v919 = vpop.f32.mrb[0].mxu0
    %v920 = vadd.f32 %v843, %v919
    %v921 = vpop.f32.mrb[0].mxu0
    %v922 = vpop.f32.mrb[0].mxu0
    %v923 = vadd.f32 %v843, %v922
    %v924 = vpop.f32.mrb[0].mxu0
    %925 = vmatprep.mubr.bf16.mxu0 0
    %926 = vmatmul.mubr.bf16.gmra.mrb[0].mxu0 %v877
    %v927 = vpop.f32.mrb[0].mxu0
    %v928 = vadd.f32 %v843, %v927
    %v929 = vpop.f32.mrb[0].mxu0
    %v930 = vpop.f32.mrb[0].mxu0
    %v931 = vadd.f32 %v843, %v930
    %v932 = vpop.f32.mrb[0].mxu0
    %933 = vmatprep.mubr.bf16.mxu0 0
    %934 = vmatmul.mubr.bf16.gmra.mrb[0].mxu0 %v880
    %v935 = vpop.f32.mrb[0].mxu0
    %v936 = vadd.f32 %v843, %v935
    %v937 = vpop.f32.mrb[0].mxu0
    %v938 = vpop.f32.mrb[0].mxu0
    %v939 = vadd.f32 %v843, %v938
    %v940 = vpop.f32.mrb[0].mxu0
    %941 = vmatprep.mubr.bf16.mxu0 0
    %942 = vmatmul.mubr.bf16.gmra.mrb[0].mxu0 %v883
    %v943 = vpop.f32.mrb[0].mxu0
    %v944 = vadd.f32 %v843, %v943
    %v945 = vpop.f32.mrb[0].mxu0
    %v946 = vpop.f32.mrb[0].mxu0
    %v947 = vpop.f32.mrb[0].mxu0
    %948 = vdwg.mxu0
    %951 = vmatprep.subr.bf16.mxu0 0
    %952 = vmatpush1.bf16.msra.mxu0 %v865
    %953 = vmatprep.subr.bf16.mxu0 0
    %954 = vmatpush1.bf16.msra.mxu0 %v866
    %955 = vmatprep.subr.bf16.mxu0 0
    %956 = vmatpush1.bf16.msra.mxu0 0
    %957 = vmatprep.subr.bf16.mxu0 0
    %958 = vmatpush1.bf16.msra.mxu0 0
    %959 = vmatprep.subr.bf16.mxu0 0
    %960 = vmatpush1.bf16.msra.mxu0 0
    %961 = vmatprep.subr.bf16.mxu0 0
    %962 = vmatpush1.bf16.msra.mxu0 0
    %963 = vmatprep.subr.bf16.mxu0 0
    %964 = vmatpush1.bf16.msra.mxu0 0
    %965 = vmatprep.subr.bf16.mxu0 0
    %966 = vmatpush1.bf16.msra.mxu0 0
    %967 = vmatprep.subr.bf16.mxu0 0
    %968 = vmatpush1.bf16.msra.mxu0 0
    %969 = vmatprep.subr.bf16.mxu0 0
    %970 = vmatpush1.bf16.msra.mxu0 0
    %971 = vmatprep.subr.bf16.mxu0 0
    %972 = vmatpush1.bf16.msra.mxu0 0
    %973 = vmatprep.subr.bf16.mxu0 0
    %974 = vmatpush1.bf16.msra.mxu0 0
    %975 = vmatprep.subr.bf16.mxu0 0
    %976 = vmatpush1.bf16.msra.mxu0 0
    %977 = vmatprep.subr.bf16.mxu0 0
    %978 = vmatpush1.bf16.msra.mxu0 0
    %979 = vmatprep.subr.bf16.mxu0 0
    %980 = vmatpush1.bf16.msra.mxu0 0
    %981 = vmatprep.subr.bf16.mxu0 0
    %982 = vmatpush1.bf16.msra.mxu0 0
    %983 = vmatprep.mubr.bf16.mxu0 0
    %984 = vmatmul.mubr.bf16.gmra.mrb[0].mxu0 %v336
    %v985 = vpop.f32.mrb[0].mxu0
    %v986 = vadd.f32 %v920, %v985
    %v987 = vpop.f32.mrb[0].mxu0
    %v988 = vpop.f32.mrb[0].mxu0
    %v989 = vpop.f32.mrb[0].mxu0
    %990 = vdwg.mxu0
    %vm991 = vcmp.gt.f32.partialorder %v986, 0.0
    %v992 = vmul.f32 %v986, 0.01
    %v993 = vsel %vm991, %v986, %v992
    %v994 = vpack.c.bf16 %v993, %v993
    %995 = vrot.lane.b32.xlu0 %v865, 64
    %v996 = vpop.permute.xlu0 %995
    %997 = vrot.lane.b32.xlu0 %v866, 64
    %v998 = vpop.permute.xlu0 %997
    %1001 = vrot.lane.b32.xlu0 %v843, 96
    %v1002 = vpop.permute.xlu0 %1001
    %v1005 = vsel %vm121, %v994, 0
    %1007 = vmatprep.subr.bf16.mxu0 0
    %1008 = vmatpush1.bf16.msra.mxu0 %v996
    %1009 = vmatprep.subr.bf16.mxu0 0
    %1010 = vmatpush1.bf16.msra.mxu0 %v998
    %1011 = vmatprep.subr.bf16.mxu0 0
    %1012 = vmatpush1.bf16.msra.mxu0 0
    %1013 = vmatprep.subr.bf16.mxu0 0
    %1014 = vmatpush1.bf16.msra.mxu0 0
    %1015 = vmatprep.subr.bf16.mxu0 0
    %1016 = vmatpush1.bf16.msra.mxu0 0
    %1017 = vmatprep.subr.bf16.mxu0 0
    %1018 = vmatpush1.bf16.msra.mxu0 0
    %1019 = vmatprep.subr.bf16.mxu0 0
    %1020 = vmatpush1.bf16.msra.mxu0 0
    %1021 = vmatprep.subr.bf16.mxu0 0
    %1022 = vmatpush1.bf16.msra.mxu0 0
    %1023 = vmatprep.subr.bf16.mxu0 0
    %1024 = vmatpush1.bf16.msra.mxu0 0
    %1025 = vmatprep.subr.bf16.mxu0 0
    %1026 = vmatpush1.bf16.msra.mxu0 0
    %1027 = vmatprep.subr.bf16.mxu0 0
    %1028 = vmatpush1.bf16.msra.mxu0 0
    %1029 = vmatprep.subr.bf16.mxu0 0
    %1030 = vmatpush1.bf16.msra.mxu0 0
    %1031 = vmatprep.subr.bf16.mxu0 0
    %1032 = vmatpush1.bf16.msra.mxu0 0
    %1033 = vmatprep.subr.bf16.mxu0 0
    %1034 = vmatpush1.bf16.msra.mxu0 0
    %1035 = vmatprep.subr.bf16.mxu0 0
    %1036 = vmatpush1.bf16.msra.mxu0 0
    %1037 = vmatprep.subr.bf16.mxu0 0
    %1038 = vmatpush1.bf16.msra.mxu0 0
    %1039 = vmatprep.mubr.bf16.mxu0 0
    %1040 = vmatmul.mubr.bf16.gmra.mrb[0].mxu0 %v1005
    %v1041 = vpop.f32.mrb[0].mxu0
    %v1042 = vadd.f32 %v1002, %v1041
    %v1043 = vpop.f32.mrb[0].mxu0
    %v1044 = vpop.f32.mrb[0].mxu0
    %v1045 = vpop.f32.mrb[0].mxu0
    %1046 = vdwg.mxu0
    %vm1047 = vcmp.gt.f32.partialorder %v1042, 0.0
    %v1048 = vmul.f32 %v1042, 0.01
    %v1049 = vsel %vm1047, %v1042, %v1048
    %v1050 = vpack.c.bf16 %v1049, %v1049
    %v1052 = vsel %vm121, %v1050, 0
    %1054 = vmatprep.subr.bf16.mxu0 0
    %1055 = vmatpush1.bf16.msra.mxu0 %v865
    %1056 = vmatprep.subr.bf16.mxu0 0
    %1057 = vmatpush1.bf16.msra.mxu0 %v866
    %1058 = vmatprep.subr.bf16.mxu0 0
    %1059 = vmatpush1.bf16.msra.mxu0 0
    %1060 = vmatprep.subr.bf16.mxu0 0
    %1061 = vmatpush1.bf16.msra.mxu0 0
    %1062 = vmatprep.subr.bf16.mxu0 0
    %1063 = vmatpush1.bf16.msra.mxu0 0
    %1064 = vmatprep.subr.bf16.mxu0 0
    %1065 = vmatpush1.bf16.msra.mxu0 0
    %1066 = vmatprep.subr.bf16.mxu0 0
    %1067 = vmatpush1.bf16.msra.mxu0 0
    %1068 = vmatprep.subr.bf16.mxu0 0
    %1069 = vmatpush1.bf16.msra.mxu0 0
    %1070 = vmatprep.subr.bf16.mxu0 0
    %1071 = vmatpush1.bf16.msra.mxu0 0
    %1072 = vmatprep.subr.bf16.mxu0 0
    %1073 = vmatpush1.bf16.msra.mxu0 0
    %1074 = vmatprep.subr.bf16.mxu0 0
    %1075 = vmatpush1.bf16.msra.mxu0 0
    %1076 = vmatprep.subr.bf16.mxu0 0
    %1077 = vmatpush1.bf16.msra.mxu0 0
    %1078 = vmatprep.subr.bf16.mxu0 0
    %1079 = vmatpush1.bf16.msra.mxu0 0
    %1080 = vmatprep.subr.bf16.mxu0 0
    %1081 = vmatpush1.bf16.msra.mxu0 0
    %1082 = vmatprep.subr.bf16.mxu0 0
    %1083 = vmatpush1.bf16.msra.mxu0 0
    %1084 = vmatprep.subr.bf16.mxu0 0
    %1085 = vmatpush1.bf16.msra.mxu0 0
    %1086 = vmatprep.mubr.bf16.mxu0 0
    %1087 = vmatmul.mubr.bf16.gmra.mrb[0].mxu0 %v1052
    %v1088 = vpop.f32.mrb[0].mxu0
    %v1089 = vadd.f32 %v923, %v1088
    %v1090 = vpop.f32.mrb[0].mxu0
    %v1091 = vpop.f32.mrb[0].mxu0
    %v1092 = vpop.f32.mrb[0].mxu0
    %1093 = vdwg.mxu0
    %vm1094 = vcmp.gt.f32.partialorder %v1089, 0.0
    %v1095 = vmul.f32 %v1089, 0.01
    %v1096 = vsel %vm1094, %v1089, %v1095
    %v1097 = vpack.c.bf16 %v1096, %v1096
    %v1099 = vsel %vm121, %v1097, 0
    %1101 = vmatprep.subr.bf16.mxu0 0
    %1102 = vmatpush1.bf16.msra.mxu0 %v996
    %1103 = vmatprep.subr.bf16.mxu0 0
    %1104 = vmatpush1.bf16.msra.mxu0 %v998
    %1105 = vmatprep.subr.bf16.mxu0 0
    %1106 = vmatpush1.bf16.msra.mxu0 0
    %1107 = vmatprep.subr.bf16.mxu0 0
    %1108 = vmatpush1.bf16.msra.mxu0 0
    %1109 = vmatprep.subr.bf16.mxu0 0
    %1110 = vmatpush1.bf16.msra.mxu0 0
    %1111 = vmatprep.subr.bf16.mxu0 0
    %1112 = vmatpush1.bf16.msra.mxu0 0
    %1113 = vmatprep.subr.bf16.mxu0 0
    %1114 = vmatpush1.bf16.msra.mxu0 0
    %1115 = vmatprep.subr.bf16.mxu0 0
    %1116 = vmatpush1.bf16.msra.mxu0 0
    %1117 = vmatprep.subr.bf16.mxu0 0
    %1118 = vmatpush1.bf16.msra.mxu0 0
    %1119 = vmatprep.subr.bf16.mxu0 0
    %1120 = vmatpush1.bf16.msra.mxu0 0
    %1121 = vmatprep.subr.bf16.mxu0 0
    %1122 = vmatpush1.bf16.msra.mxu0 0
    %1123 = vmatprep.subr.bf16.mxu0 0
    %1124 = vmatpush1.bf16.msra.mxu0 0
    %1125 = vmatprep.subr.bf16.mxu0 0
    %1126 = vmatpush1.bf16.msra.mxu0 0
    %1127 = vmatprep.subr.bf16.mxu0 0
    %1128 = vmatpush1.bf16.msra.mxu0 0
    %1129 = vmatprep.subr.bf16.mxu0 0
    %1130 = vmatpush1.bf16.msra.mxu0 0
    %1131 = vmatprep.subr.bf16.mxu0 0
    %1132 = vmatpush1.bf16.msra.mxu0 0
    %1133 = vmatprep.mubr.bf16.mxu0 0
    %1134 = vmatmul.mubr.bf16.gmra.mrb[0].mxu0 %v1099
    %v1135 = vpop.f32.mrb[0].mxu0
    %v1136 = vadd.f32 %v1002, %v1135
    %v1137 = vpop.f32.mrb[0].mxu0
    %v1138 = vpop.f32.mrb[0].mxu0
    %v1139 = vpop.f32.mrb[0].mxu0
    %1140 = vdwg.mxu0
    %vm1141 = vcmp.gt.f32.partialorder %v1136, 0.0
    %v1142 = vmul.f32 %v1136, 0.01
    %v1143 = vsel %vm1141, %v1136, %v1142
    %v1144 = vpack.c.bf16 %v1143, %v1143
    %v1146 = vsel %vm121, %v1144, 0
    %1148 = vmatprep.subr.bf16.mxu0 0
    %1149 = vmatpush1.bf16.msra.mxu0 %v865
    %1150 = vmatprep.subr.bf16.mxu0 0
    %1151 = vmatpush1.bf16.msra.mxu0 %v866
    %1152 = vmatprep.subr.bf16.mxu0 0
    %1153 = vmatpush1.bf16.msra.mxu0 0
    %1154 = vmatprep.subr.bf16.mxu0 0
    %1155 = vmatpush1.bf16.msra.mxu0 0
    %1156 = vmatprep.subr.bf16.mxu0 0
    %1157 = vmatpush1.bf16.msra.mxu0 0
    %1158 = vmatprep.subr.bf16.mxu0 0
    %1159 = vmatpush1.bf16.msra.mxu0 0
    %1160 = vmatprep.subr.bf16.mxu0 0
    %1161 = vmatpush1.bf16.msra.mxu0 0
    %1162 = vmatprep.subr.bf16.mxu0 0
    %1163 = vmatpush1.bf16.msra.mxu0 0
    %1164 = vmatprep.subr.bf16.mxu0 0
    %1165 = vmatpush1.bf16.msra.mxu0 0
    %1166 = vmatprep.subr.bf16.mxu0 0
    %1167 = vmatpush1.bf16.msra.mxu0 0
    %1168 = vmatprep.subr.bf16.mxu0 0
    %1169 = vmatpush1.bf16.msra.mxu0 0
    %1170 = vmatprep.subr.bf16.mxu0 0
    %1171 = vmatpush1.bf16.msra.mxu0 0
    %1172 = vmatprep.subr.bf16.mxu0 0
    %1173 = vmatpush1.bf16.msra.mxu0 0
    %1174 = vmatprep.subr.bf16.mxu0 0
    %1175 = vmatpush1.bf16.msra.mxu0 0
    %1176 = vmatprep.subr.bf16.mxu0 0
    %1177 = vmatpush1.bf16.msra.mxu0 0
    %1178 = vmatprep.subr.bf16.mxu0 0
    %1179 = vmatpush1.bf16.msra.mxu0 0
    %1180 = vmatprep.mubr.bf16.mxu0 0
    %1181 = vmatmul.mubr.bf16.gmra.mrb[0].mxu0 %v1146
    %v1182 = vpop.f32.mrb[0].mxu0
    %v1183 = vadd.f32 %v928, %v1182
    %v1184 = vpop.f32.mrb[0].mxu0
    %v1185 = vpop.f32.mrb[0].mxu0
    %v1186 = vpop.f32.mrb[0].mxu0
    %1187 = vdwg.mxu0
    %vm1188 = vcmp.gt.f32.partialorder %v1183, 0.0
    %v1189 = vmul.f32 %v1183, 0.01
    %v1190 = vsel %vm1188, %v1183, %v1189
    %v1191 = vpack.c.bf16 %v1190, %v1190
    %v1193 = vsel %vm121, %v1191, 0
    %1195 = vmatprep.subr.bf16.mxu0 0
    %1196 = vmatpush1.bf16.msra.mxu0 %v996
    %1197 = vmatprep.subr.bf16.mxu0 0
    %1198 = vmatpush1.bf16.msra.mxu0 %v998
    %1199 = vmatprep.subr.bf16.mxu0 0
    %1200 = vmatpush1.bf16.msra.mxu0 0
    %1201 = vmatprep.subr.bf16.mxu0 0
    %1202 = vmatpush1.bf16.msra.mxu0 0
    %1203 = vmatprep.subr.bf16.mxu0 0
    %1204 = vmatpush1.bf16.msra.mxu0 0
    %1205 = vmatprep.subr.bf16.mxu0 0
    %1206 = vmatpush1.bf16.msra.mxu0 0
    %1207 = vmatprep.subr.bf16.mxu0 0
    %1208 = vmatpush1.bf16.msra.mxu0 0
    %1209 = vmatprep.subr.bf16.mxu0 0
    %1210 = vmatpush1.bf16.msra.mxu0 0
    %1211 = vmatprep.subr.bf16.mxu0 0
    %1212 = vmatpush1.bf16.msra.mxu0 0
    %1213 = vmatprep.subr.bf16.mxu0 0
    %1214 = vmatpush1.bf16.msra.mxu0 0
    %1215 = vmatprep.subr.bf16.mxu0 0
    %1216 = vmatpush1.bf16.msra.mxu0 0
    %1217 = vmatprep.subr.bf16.mxu0 0
    %1218 = vmatpush1.bf16.msra.mxu0 0
    %1219 = vmatprep.subr.bf16.mxu0 0
    %1220 = vmatpush1.bf16.msra.mxu0 0
    %1221 = vmatprep.subr.bf16.mxu0 0
    %1222 = vmatpush1.bf16.msra.mxu0 0
    %1223 = vmatprep.subr.bf16.mxu0 0
    %1224 = vmatpush1.bf16.msra.mxu0 0
    %1225 = vmatprep.subr.bf16.mxu0 0
    %1226 = vmatpush1.bf16.msra.mxu0 0
    %1227 = vmatprep.mubr.bf16.mxu0 0
    %1228 = vmatmul.mubr.bf16.gmra.mrb[0].mxu0 %v1193
    %v1229 = vpop.f32.mrb[0].mxu0
    %v1230 = vadd.f32 %v1002, %v1229
    %v1231 = vpop.f32.mrb[0].mxu0
    %v1232 = vpop.f32.mrb[0].mxu0
    %v1233 = vpop.f32.mrb[0].mxu0
    %1234 = vdwg.mxu0
    %vm1235 = vcmp.gt.f32.partialorder %v1230, 0.0
    %v1236 = vmul.f32 %v1230, 0.01
    %v1237 = vsel %vm1235, %v1230, %v1236
    %v1238 = vpack.c.bf16 %v1237, %v1237
    %v1240 = vsel %vm121, %v1238, 0
    %1242 = vmatprep.subr.bf16.mxu0 0
    %1243 = vmatpush1.bf16.msra.mxu0 %v865
    %1244 = vmatprep.subr.bf16.mxu0 0
    %1245 = vmatpush1.bf16.msra.mxu0 %v866
    %1246 = vmatprep.subr.bf16.mxu0 0
    %1247 = vmatpush1.bf16.msra.mxu0 0
    %1248 = vmatprep.subr.bf16.mxu0 0
    %1249 = vmatpush1.bf16.msra.mxu0 0
    %1250 = vmatprep.subr.bf16.mxu0 0
    %1251 = vmatpush1.bf16.msra.mxu0 0
    %1252 = vmatprep.subr.bf16.mxu0 0
    %1253 = vmatpush1.bf16.msra.mxu0 0
    %1254 = vmatprep.subr.bf16.mxu0 0
    %1255 = vmatpush1.bf16.msra.mxu0 0
    %1256 = vmatprep.subr.bf16.mxu0 0
    %1257 = vmatpush1.bf16.msra.mxu0 0
    %1258 = vmatprep.subr.bf16.mxu0 0
    %1259 = vmatpush1.bf16.msra.mxu0 0
    %1260 = vmatprep.subr.bf16.mxu0 0
    %1261 = vmatpush1.bf16.msra.mxu0 0
    %1262 = vmatprep.subr.bf16.mxu0 0
    %1263 = vmatpush1.bf16.msra.mxu0 0
    %1264 = vmatprep.subr.bf16.mxu0 0
    %1265 = vmatpush1.bf16.msra.mxu0 0
    %1266 = vmatprep.subr.bf16.mxu0 0
    %1267 = vmatpush1.bf16.msra.mxu0 0
    %1268 = vmatprep.subr.bf16.mxu0 0
    %1269 = vmatpush1.bf16.msra.mxu0 0
    %1270 = vmatprep.subr.bf16.mxu0 0
    %1271 = vmatpush1.bf16.msra.mxu0 0
    %1272 = vmatprep.subr.bf16.mxu0 0
    %1273 = vmatpush1.bf16.msra.mxu0 0
    %1274 = vmatprep.mubr.bf16.mxu0 0
    %1275 = vmatmul.mubr.bf16.gmra.mrb[0].mxu0 %v1240
    %v1276 = vpop.f32.mrb[0].mxu0
    %v1277 = vadd.f32 %v931, %v1276
    %v1278 = vpop.f32.mrb[0].mxu0
    %v1279 = vpop.f32.mrb[0].mxu0
    %v1280 = vpop.f32.mrb[0].mxu0
    %1281 = vdwg.mxu0
    %vm1282 = vcmp.gt.f32.partialorder %v1277, 0.0
    %v1283 = vmul.f32 %v1277, 0.01
    %v1284 = vsel %vm1282, %v1277, %v1283
    %v1285 = vpack.c.bf16 %v1284, %v1284
    %v1287 = vsel %vm121, %v1285, 0
    %1289 = vmatprep.subr.bf16.mxu0 0
    %1290 = vmatpush1.bf16.msra.mxu0 %v996
    %1291 = vmatprep.subr.bf16.mxu0 0
    %1292 = vmatpush1.bf16.msra.mxu0 %v998
    %1293 = vmatprep.subr.bf16.mxu0 0
    %1294 = vmatpush1.bf16.msra.mxu0 0
    %1295 = vmatprep.subr.bf16.mxu0 0
    %1296 = vmatpush1.bf16.msra.mxu0 0
    %1297 = vmatprep.subr.bf16.mxu0 0
    %1298 = vmatpush1.bf16.msra.mxu0 0
    %1299 = vmatprep.subr.bf16.mxu0 0
    %1300 = vmatpush1.bf16.msra.mxu0 0
    %1301 = vmatprep.subr.bf16.mxu0 0
    %1302 = vmatpush1.bf16.msra.mxu0 0
    %1303 = vmatprep.subr.bf16.mxu0 0
    %1304 = vmatpush1.bf16.msra.mxu0 0
    %1305 = vmatprep.subr.bf16.mxu0 0
    %1306 = vmatpush1.bf16.msra.mxu0 0
    %1307 = vmatprep.subr.bf16.mxu0 0
    %1308 = vmatpush1.bf16.msra.mxu0 0
    %1309 = vmatprep.subr.bf16.mxu0 0
    %1310 = vmatpush1.bf16.msra.mxu0 0
    %1311 = vmatprep.subr.bf16.mxu0 0
    %1312 = vmatpush1.bf16.msra.mxu0 0
    %1313 = vmatprep.subr.bf16.mxu0 0
    %1314 = vmatpush1.bf16.msra.mxu0 0
    %1315 = vmatprep.subr.bf16.mxu0 0
    %1316 = vmatpush1.bf16.msra.mxu0 0
    %1317 = vmatprep.subr.bf16.mxu0 0
    %1318 = vmatpush1.bf16.msra.mxu0 0
    %1319 = vmatprep.subr.bf16.mxu0 0
    %1320 = vmatpush1.bf16.msra.mxu0 0
    %1321 = vmatprep.mubr.bf16.mxu0 0
    %1322 = vmatmul.mubr.bf16.gmra.mrb[0].mxu0 %v1287
    %v1323 = vpop.f32.mrb[0].mxu0
    %v1324 = vadd.f32 %v1002, %v1323
    %v1325 = vpop.f32.mrb[0].mxu0
    %v1326 = vpop.f32.mrb[0].mxu0
    %v1327 = vpop.f32.mrb[0].mxu0
    %1328 = vdwg.mxu0
    %vm1329 = vcmp.gt.f32.partialorder %v1324, 0.0
    %v1330 = vmul.f32 %v1324, 0.01
    %v1331 = vsel %vm1329, %v1324, %v1330
    %v1332 = vpack.c.bf16 %v1331, %v1331
    %v1334 = vsel %vm121, %v1332, 0
    %1336 = vmatprep.subr.bf16.mxu0 0
    %1337 = vmatpush1.bf16.msra.mxu0 %v865
    %1338 = vmatprep.subr.bf16.mxu0 0
    %1339 = vmatpush1.bf16.msra.mxu0 %v866
    %1340 = vmatprep.subr.bf16.mxu0 0
    %1341 = vmatpush1.bf16.msra.mxu0 0
    %1342 = vmatprep.subr.bf16.mxu0 0
    %1343 = vmatpush1.bf16.msra.mxu0 0
    %1344 = vmatprep.subr.bf16.mxu0 0
    %1345 = vmatpush1.bf16.msra.mxu0 0
    %1346 = vmatprep.subr.bf16.mxu0 0
    %1347 = vmatpush1.bf16.msra.mxu0 0
    %1348 = vmatprep.subr.bf16.mxu0 0
    %1349 = vmatpush1.bf16.msra.mxu0 0
    %1350 = vmatprep.subr.bf16.mxu0 0
    %1351 = vmatpush1.bf16.msra.mxu0 0
    %1352 = vmatprep.subr.bf16.mxu0 0
    %1353 = vmatpush1.bf16.msra.mxu0 0
    %1354 = vmatprep.subr.bf16.mxu0 0
    %1355 = vmatpush1.bf16.msra.mxu0 0
    %1356 = vmatprep.subr.bf16.mxu0 0
    %1357 = vmatpush1.bf16.msra.mxu0 0
    %1358 = vmatprep.subr.bf16.mxu0 0
    %1359 = vmatpush1.bf16.msra.mxu0 0
    %1360 = vmatprep.subr.bf16.mxu0 0
    %1361 = vmatpush1.bf16.msra.mxu0 0
    %1362 = vmatprep.subr.bf16.mxu0 0
    %1363 = vmatpush1.bf16.msra.mxu0 0
    %1364 = vmatprep.subr.bf16.mxu0 0
    %1365 = vmatpush1.bf16.msra.mxu0 0
    %1366 = vmatprep.subr.bf16.mxu0 0
    %1367 = vmatpush1.bf16.msra.mxu0 0
    %1368 = vmatprep.mubr.bf16.mxu0 0
    %1369 = vmatmul.mubr.bf16.gmra.mrb[0].mxu0 %v1334
    %v1370 = vpop.f32.mrb[0].mxu0
    %v1371 = vadd.f32 %v936, %v1370
    %v1372 = vpop.f32.mrb[0].mxu0
    %v1373 = vpop.f32.mrb[0].mxu0
    %v1374 = vpop.f32.mrb[0].mxu0
    %1375 = vdwg.mxu0
    %vm1376 = vcmp.gt.f32.partialorder %v1371, 0.0
    %v1377 = vmul.f32 %v1371, 0.01
    %v1378 = vsel %vm1376, %v1371, %v1377
    %v1379 = vpack.c.bf16 %v1378, %v1378
    %v1381 = vsel %vm121, %v1379, 0
    %1383 = vmatprep.subr.bf16.mxu0 0
    %1384 = vmatpush1.bf16.msra.mxu0 %v996
    %1385 = vmatprep.subr.bf16.mxu0 0
    %1386 = vmatpush1.bf16.msra.mxu0 %v998
    %1387 = vmatprep.subr.bf16.mxu0 0
    %1388 = vmatpush1.bf16.msra.mxu0 0
    %1389 = vmatprep.subr.bf16.mxu0 0
    %1390 = vmatpush1.bf16.msra.mxu0 0
    %1391 = vmatprep.subr.bf16.mxu0 0
    %1392 = vmatpush1.bf16.msra.mxu0 0
    %1393 = vmatprep.subr.bf16.mxu0 0
    %1394 = vmatpush1.bf16.msra.mxu0 0
    %1395 = vmatprep.subr.bf16.mxu0 0
    %1396 = vmatpush1.bf16.msra.mxu0 0
    %1397 = vmatprep.subr.bf16.mxu0 0
    %1398 = vmatpush1.bf16.msra.mxu0 0
    %1399 = vmatprep.subr.bf16.mxu0 0
    %1400 = vmatpush1.bf16.msra.mxu0 0
    %1401 = vmatprep.subr.bf16.mxu0 0
    %1402 = vmatpush1.bf16.msra.mxu0 0
    %1403 = vmatprep.subr.bf16.mxu0 0
    %1404 = vmatpush1.bf16.msra.mxu0 0
    %1405 = vmatprep.subr.bf16.mxu0 0
    %1406 = vmatpush1.bf16.msra.mxu0 0
    %1407 = vmatprep.subr.bf16.mxu0 0
    %1408 = vmatpush1.bf16.msra.mxu0 0
    %1409 = vmatprep.subr.bf16.mxu0 0
    %1410 = vmatpush1.bf16.msra.mxu0 0
    %1411 = vmatprep.subr.bf16.mxu0 0
    %1412 = vmatpush1.bf16.msra.mxu0 0
    %1413 = vmatprep.subr.bf16.mxu0 0
    %1414 = vmatpush1.bf16.msra.mxu0 0
    %1415 = vmatprep.mubr.bf16.mxu0 0
    %1416 = vmatmul.mubr.bf16.gmra.mrb[0].mxu0 %v1381
    %v1417 = vpop.f32.mrb[0].mxu0
    %v1418 = vadd.f32 %v1002, %v1417
    %v1419 = vpop.f32.mrb[0].mxu0
    %v1420 = vpop.f32.mrb[0].mxu0
    %v1421 = vpop.f32.mrb[0].mxu0
    %1422 = vdwg.mxu0
    %vm1423 = vcmp.gt.f32.partialorder %v1418, 0.0
    %v1424 = vmul.f32 %v1418, 0.01
    %v1425 = vsel %vm1423, %v1418, %v1424
    %v1426 = vpack.c.bf16 %v1425, %v1425
    %v1428 = vsel %vm121, %v1426, 0
    %1430 = vmatprep.subr.bf16.mxu0 0
    %1431 = vmatpush1.bf16.msra.mxu0 %v865
    %1432 = vmatprep.subr.bf16.mxu0 0
    %1433 = vmatpush1.bf16.msra.mxu0 %v866
    %1434 = vmatprep.subr.bf16.mxu0 0
    %1435 = vmatpush1.bf16.msra.mxu0 0
    %1436 = vmatprep.subr.bf16.mxu0 0
    %1437 = vmatpush1.bf16.msra.mxu0 0
    %1438 = vmatprep.subr.bf16.mxu0 0
    %1439 = vmatpush1.bf16.msra.mxu0 0
    %1440 = vmatprep.subr.bf16.mxu0 0
    %1441 = vmatpush1.bf16.msra.mxu0 0
    %1442 = vmatprep.subr.bf16.mxu0 0
    %1443 = vmatpush1.bf16.msra.mxu0 0
    %1444 = vmatprep.subr.bf16.mxu0 0
    %1445 = vmatpush1.bf16.msra.mxu0 0
    %1446 = vmatprep.subr.bf16.mxu0 0
    %1447 = vmatpush1.bf16.msra.mxu0 0
    %1448 = vmatprep.subr.bf16.mxu0 0
    %1449 = vmatpush1.bf16.msra.mxu0 0
    %1450 = vmatprep.subr.bf16.mxu0 0
    %1451 = vmatpush1.bf16.msra.mxu0 0
    %1452 = vmatprep.subr.bf16.mxu0 0
    %1453 = vmatpush1.bf16.msra.mxu0 0
    %1454 = vmatprep.subr.bf16.mxu0 0
    %1455 = vmatpush1.bf16.msra.mxu0 0
    %1456 = vmatprep.subr.bf16.mxu0 0
    %1457 = vmatpush1.bf16.msra.mxu0 0
    %1458 = vmatprep.subr.bf16.mxu0 0
    %1459 = vmatpush1.bf16.msra.mxu0 0
    %1460 = vmatprep.subr.bf16.mxu0 0
    %1461 = vmatpush1.bf16.msra.mxu0 0
    %1462 = vmatprep.mubr.bf16.mxu0 0
    %1463 = vmatmul.mubr.bf16.gmra.mrb[0].mxu0 %v1428
    %v1464 = vpop.f32.mrb[0].mxu0
    %v1465 = vadd.f32 %v939, %v1464
    %v1466 = vpop.f32.mrb[0].mxu0
    %v1467 = vpop.f32.mrb[0].mxu0
    %v1468 = vpop.f32.mrb[0].mxu0
    %1469 = vdwg.mxu0
    %vm1470 = vcmp.gt.f32.partialorder %v1465, 0.0
    %v1471 = vmul.f32 %v1465, 0.01
    %v1472 = vsel %vm1470, %v1465, %v1471
    %v1473 = vpack.c.bf16 %v1472, %v1472
    %v1475 = vsel %vm121, %v1473, 0
    %1477 = vmatprep.subr.bf16.mxu0 0
    %1478 = vmatpush1.bf16.msra.mxu0 %v996
    %1479 = vmatprep.subr.bf16.mxu0 0
    %1480 = vmatpush1.bf16.msra.mxu0 %v998
    %1481 = vmatprep.subr.bf16.mxu0 0
    %1482 = vmatpush1.bf16.msra.mxu0 0
    %1483 = vmatprep.subr.bf16.mxu0 0
    %1484 = vmatpush1.bf16.msra.mxu0 0
    %1485 = vmatprep.subr.bf16.mxu0 0
    %1486 = vmatpush1.bf16.msra.mxu0 0
    %1487 = vmatprep.subr.bf16.mxu0 0
    %1488 = vmatpush1.bf16.msra.mxu0 0
    %1489 = vmatprep.subr.bf16.mxu0 0
    %1490 = vmatpush1.bf16.msra.mxu0 0
    %1491 = vmatprep.subr.bf16.mxu0 0
    %1492 = vmatpush1.bf16.msra.mxu0 0
    %1493 = vmatprep.subr.bf16.mxu0 0
    %1494 = vmatpush1.bf16.msra.mxu0 0
    %1495 = vmatprep.subr.bf16.mxu0 0
    %1496 = vmatpush1.bf16.msra.mxu0 0
    %1497 = vmatprep.subr.bf16.mxu0 0
    %1498 = vmatpush1.bf16.msra.mxu0 0
    %1499 = vmatprep.subr.bf16.mxu0 0
    %1500 = vmatpush1.bf16.msra.mxu0 0
    %1501 = vmatprep.subr.bf16.mxu0 0
    %1502 = vmatpush1.bf16.msra.mxu0 0
    %1503 = vmatprep.subr.bf16.mxu0 0
    %1504 = vmatpush1.bf16.msra.mxu0 0
    %1505 = vmatprep.subr.bf16.mxu0 0
    %1506 = vmatpush1.bf16.msra.mxu0 0
    %1507 = vmatprep.subr.bf16.mxu0 0
    %1508 = vmatpush1.bf16.msra.mxu0 0
    %1509 = vmatprep.mubr.bf16.mxu0 0
    %1510 = vmatmul.mubr.bf16.gmra.mrb[0].mxu0 %v1475
    %v1511 = vpop.f32.mrb[0].mxu0
    %v1512 = vadd.f32 %v1002, %v1511
    %v1513 = vpop.f32.mrb[0].mxu0
    %v1514 = vpop.f32.mrb[0].mxu0
    %v1515 = vpop.f32.mrb[0].mxu0
    %1516 = vdwg.mxu0
    %vm1517 = vcmp.gt.f32.partialorder %v1512, 0.0
    %v1518 = vmul.f32 %v1512, 0.01
    %v1519 = vsel %vm1517, %v1512, %v1518
    %v1520 = vpack.c.bf16 %v1519, %v1519
    %v1522 = vsel %vm121, %v1520, 0
    %1524 = vmatprep.subr.bf16.mxu0 0
    %1525 = vmatpush1.bf16.msra.mxu0 %v865
    %1526 = vmatprep.subr.bf16.mxu0 0
    %1527 = vmatpush1.bf16.msra.mxu0 %v866
    %1528 = vmatprep.subr.bf16.mxu0 0
    %1529 = vmatpush1.bf16.msra.mxu0 0
    %1530 = vmatprep.subr.bf16.mxu0 0
    %1531 = vmatpush1.bf16.msra.mxu0 0
    %1532 = vmatprep.subr.bf16.mxu0 0
    %1533 = vmatpush1.bf16.msra.mxu0 0
    %1534 = vmatprep.subr.bf16.mxu0 0
    %1535 = vmatpush1.bf16.msra.mxu0 0
    %1536 = vmatprep.subr.bf16.mxu0 0
    %1537 = vmatpush1.bf16.msra.mxu0 0
    %1538 = vmatprep.subr.bf16.mxu0 0
    %1539 = vmatpush1.bf16.msra.mxu0 0
    %1540 = vmatprep.subr.bf16.mxu0 0
    %1541 = vmatpush1.bf16.msra.mxu0 0
    %1542 = vmatprep.subr.bf16.mxu0 0
    %1543 = vmatpush1.bf16.msra.mxu0 0
    %1544 = vmatprep.subr.bf16.mxu0 0
    %1545 = vmatpush1.bf16.msra.mxu0 0
    %1546 = vmatprep.subr.bf16.mxu0 0
    %1547 = vmatpush1.bf16.msra.mxu0 0
    %1548 = vmatprep.subr.bf16.mxu0 0
    %1549 = vmatpush1.bf16.msra.mxu0 0
    %1550 = vmatprep.subr.bf16.mxu0 0
    %1551 = vmatpush1.bf16.msra.mxu0 0
    %1552 = vmatprep.subr.bf16.mxu0 0
    %1553 = vmatpush1.bf16.msra.mxu0 0
    %1554 = vmatprep.subr.bf16.mxu0 0
    %1555 = vmatpush1.bf16.msra.mxu0 0
    %1556 = vmatprep.mubr.bf16.mxu0 0
    %1557 = vmatmul.mubr.bf16.gmra.mrb[0].mxu0 %v1522
    %v1558 = vpop.f32.mrb[0].mxu0
    %v1559 = vadd.f32 %v944, %v1558
    %v1560 = vpop.f32.mrb[0].mxu0
    %v1561 = vpop.f32.mrb[0].mxu0
    %v1562 = vpop.f32.mrb[0].mxu0
    %1563 = vdwg.mxu0
    %vm1564 = vcmp.gt.f32.partialorder %v1559, 0.0
    %v1565 = vmul.f32 %v1559, 0.01
    %v1566 = vsel %vm1564, %v1559, %v1565
    %v1567 = vpack.c.bf16 %v1566, %v1566
    %v1569 = vsel %vm121, %v1567, 0
    %1571 = vmatprep.subr.bf16.mxu0 0
    %1572 = vmatpush1.bf16.msra.mxu0 %v996
    %1573 = vmatprep.subr.bf16.mxu0 0
    %1574 = vmatpush1.bf16.msra.mxu0 %v998
    %1575 = vmatprep.subr.bf16.mxu0 0
    %1576 = vmatpush1.bf16.msra.mxu0 0
    %1577 = vmatprep.subr.bf16.mxu0 0
    %1578 = vmatpush1.bf16.msra.mxu0 0
    %1579 = vmatprep.subr.bf16.mxu0 0
    %1580 = vmatpush1.bf16.msra.mxu0 0
    %1581 = vmatprep.subr.bf16.mxu0 0
    %1582 = vmatpush1.bf16.msra.mxu0 0
    %1583 = vmatprep.subr.bf16.mxu0 0
    %1584 = vmatpush1.bf16.msra.mxu0 0
    %1585 = vmatprep.subr.bf16.mxu0 0
    %1586 = vmatpush1.bf16.msra.mxu0 0
    %1587 = vmatprep.subr.bf16.mxu0 0
    %1588 = vmatpush1.bf16.msra.mxu0 0
    %1589 = vmatprep.subr.bf16.mxu0 0
    %1590 = vmatpush1.bf16.msra.mxu0 0
    %1591 = vmatprep.subr.bf16.mxu0 0
    %1592 = vmatpush1.bf16.msra.mxu0 0
    %1593 = vmatprep.subr.bf16.mxu0 0
    %1594 = vmatpush1.bf16.msra.mxu0 0
    %1595 = vmatprep.subr.bf16.mxu0 0
    %1596 = vmatpush1.bf16.msra.mxu0 0
    %1597 = vmatprep.subr.bf16.mxu0 0
    %1598 = vmatpush1.bf16.msra.mxu0 0
    %1599 = vmatprep.subr.bf16.mxu0 0
    %1600 = vmatpush1.bf16.msra.mxu0 0
    %1601 = vmatprep.subr.bf16.mxu0 0
    %1602 = vmatpush1.bf16.msra.mxu0 0
    %1603 = vmatprep.mubr.bf16.mxu0 0
    %1604 = vmatmul.mubr.bf16.gmra.mrb[0].mxu0 %v1569
    %v1605 = vpop.f32.mrb[0].mxu0
    %v1606 = vadd.f32 %v1002, %v1605
    %v1607 = vpop.f32.mrb[0].mxu0
    %v1608 = vpop.f32.mrb[0].mxu0
    %v1609 = vpop.f32.mrb[0].mxu0
    %1610 = vdwg.mxu0
    %vm1611 = vcmp.gt.f32.partialorder %v1606, 0.0
    %v1612 = vmul.f32 %v1606, 0.01
    %v1613 = vsel %vm1611, %v1606, %v1612
    %v1614 = vpack.c.bf16 %v1613, %v1613
    %1615 = vrot.lane.b32.xlu0 %v865, 32
    %v1616 = vpop.permute.xlu0 %1615
    %1617 = vrot.lane.b32.xlu0 %v866, 32
    %v1618 = vpop.permute.xlu0 %1617
    %1621 = vrot.lane.b32.xlu0 %v843, 64
    %v1622 = vpop.permute.xlu0 %1621
    %v1625 = vsel %vm121, %v1614, 0
    %1627 = vmatprep.subr.bf16.mxu0 0
    %1628 = vmatpush1.bf16.msra.mxu0 %v1616
    %1629 = vmatprep.subr.bf16.mxu0 0
    %1630 = vmatpush1.bf16.msra.mxu0 %v1618
    %1631 = vmatprep.subr.bf16.mxu0 0
    %1632 = vmatpush1.bf16.msra.mxu0 0
    %1633 = vmatprep.subr.bf16.mxu0 0
    %1634 = vmatpush1.bf16.msra.mxu0 0
    %1635 = vmatprep.subr.bf16.mxu0 0
    %1636 = vmatpush1.bf16.msra.mxu0 0
    %1637 = vmatprep.subr.bf16.mxu0 0
    %1638 = vmatpush1.bf16.msra.mxu0 0
    %1639 = vmatprep.subr.bf16.mxu0 0
    %1640 = vmatpush1.bf16.msra.mxu0 0
    %1641 = vmatprep.subr.bf16.mxu0 0
    %1642 = vmatpush1.bf16.msra.mxu0 0
    %1643 = vmatprep.subr.bf16.mxu0 0
    %1644 = vmatpush1.bf16.msra.mxu0 0
    %1645 = vmatprep.subr.bf16.mxu0 0
    %1646 = vmatpush1.bf16.msra.mxu0 0
    %1647 = vmatprep.subr.bf16.mxu0 0
    %1648 = vmatpush1.bf16.msra.mxu0 0
    %1649 = vmatprep.subr.bf16.mxu0 0
    %1650 = vmatpush1.bf16.msra.mxu0 0
    %1651 = vmatprep.subr.bf16.mxu0 0
    %1652 = vmatpush1.bf16.msra.mxu0 0
    %1653 = vmatprep.subr.bf16.mxu0 0
    %1654 = vmatpush1.bf16.msra.mxu0 0
    %1655 = vmatprep.subr.bf16.mxu0 0
    %1656 = vmatpush1.bf16.msra.mxu0 0
    %1657 = vmatprep.subr.bf16.mxu0 0
    %1658 = vmatpush1.bf16.msra.mxu0 0
    %1659 = vmatprep.mubr.bf16.mxu0 0
    %1660 = vmatmul.mubr.bf16.gmra.mrb[0].mxu0 %v1625
    %v1661 = vpop.f32.mrb[0].mxu0
    %v1662 = vadd.f32 %v1622, %v1661
    %v1663 = vpop.f32.mrb[0].mxu0
    %v1664 = vpop.f32.mrb[0].mxu0
    %v1665 = vpop.f32.mrb[0].mxu0
    %1666 = vdwg.mxu0
    %v1667 = vmax.f32 %v1662, 0.0
    %v1668 = vpack.c.bf16 %v1667, %v1667
    %v1673 = vunpack.c.l.b16 %v34
    %v1674 = vunpack.c.l.b16 %v35
    %v1675 = vunpack.c.l.b16 %v36
    %v1676 = vunpack.c.l.b16 %v37
    %v1677 = vpack.c.b16 %v1674, %v1673
    %v1678 = vpack.c.b16 %v1676, %v1675
    %1681 = vrot.lane.b32.xlu0 %v843, 32
    %v1682 = vpop.permute.xlu0 %1681
    %v1685 = vsel %vm121, %v1668, 0
    %1687 = vmatprep.subr.bf16.mxu0 0
    %1688 = vmatpush1.bf16.msra.mxu0 %v1677
    %1689 = vmatprep.subr.bf16.mxu0 0
    %1690 = vmatpush1.bf16.msra.mxu0 %v1678
    %1691 = vmatprep.subr.bf16.mxu0 0
    %1692 = vmatpush1.bf16.msra.mxu0 0
    %1693 = vmatprep.subr.bf16.mxu0 0
    %1694 = vmatpush1.bf16.msra.mxu0 0
    %1695 = vmatprep.subr.bf16.mxu0 0
    %1696 = vmatpush1.bf16.msra.mxu0 0
    %1697 = vmatprep.subr.bf16.mxu0 0
    %1698 = vmatpush1.bf16.msra.mxu0 0
    %1699 = vmatprep.subr.bf16.mxu0 0
    %1700 = vmatpush1.bf16.msra.mxu0 0
    %1701 = vmatprep.subr.bf16.mxu0 0
    %1702 = vmatpush1.bf16.msra.mxu0 0
    %1703 = vmatprep.subr.bf16.mxu0 0
    %1704 = vmatpush1.bf16.msra.mxu0 0
    %1705 = vmatprep.subr.bf16.mxu0 0
    %1706 = vmatpush1.bf16.msra.mxu0 0
    %1707 = vmatprep.subr.bf16.mxu0 0
    %1708 = vmatpush1.bf16.msra.mxu0 0
    %1709 = vmatprep.subr.bf16.mxu0 0
    %1710 = vmatpush1.bf16.msra.mxu0 0
    %1711 = vmatprep.subr.bf16.mxu0 0
    %1712 = vmatpush1.bf16.msra.mxu0 0
    %1713 = vmatprep.subr.bf16.mxu0 0
    %1714 = vmatpush1.bf16.msra.mxu0 0
    %1715 = vmatprep.subr.bf16.mxu0 0
    %1716 = vmatpush1.bf16.msra.mxu0 0
    %1717 = vmatprep.subr.bf16.mxu0 0
    %1718 = vmatpush1.bf16.msra.mxu0 0
    %1719 = vmatprep.mubr.bf16.mxu0 0
    %1720 = vmatmul.mubr.bf16.gmra.mrb[0].mxu0 %v1685
    %v1721 = vpop.f32.mrb[0].mxu0
    %v1722 = vadd.f32 %v1682, %v1721
    %v1723 = vpop.f32.mrb[0].mxu0
    %v1724 = vpop.f32.mrb[0].mxu0
    %v1725 = vpop.f32.mrb[0].mxu0
    %1726 = vdwg.mxu0
    %v1727 = vmul.f32 %v1722, %v1722
    %v1728 = vsel %vm121, %v1727, 0.0
    %1729 = vadd.xlane.f32.xlu0 %v1728
    %v1730 = vpop.xlane.xlu0 %1729
    %v1731 = vadd.f32 %v1730, 1e-12
    %v1732 = vrsqrt.pop %v1731
    %v1733 = vmul.f32 %v1722, %v1732
    %1734 = vst.msk [vmem:[#allocation4] sm:$0xff] %vm121, %v1733
    %v1736 = vsel %vm121, %v1733, 0
    %1738 = vmatprep.subr.mxu0 0.0
    %1739 = vmatpush1.xpose.msra.mxu0 %v1736
    %1740 = vmatprep.subr.mxu0 0.0
    %1741 = vmatpush1.xpose.msra.mxu0 0.0
    %1742 = vmatprep.subr.mxu0 0.0
    %1743 = vmatpush1.xpose.msra.mxu0 0.0
    %1744 = vmatprep.subr.mxu0 0.0
    %1745 = vmatpush1.xpose.msra.mxu0 0.0
    %1746 = vmatprep.subr.mxu0 0.0
    %1747 = vmatpush1.xpose.msra.mxu0 0.0
    %1748 = vmatprep.subr.mxu0 0.0
    %1749 = vmatpush1.xpose.msra.mxu0 0.0
    %1750 = vmatprep.subr.mxu0 0.0
    %1751 = vmatpush1.xpose.msra.mxu0 0.0
    %1752 = vmatprep.subr.mxu0 0.0
    %1753 = vmatpush1.xpose.msra.mxu0 0.0
    %1754 = vmatprep.subr.mxu0 0.0
    %1755 = vmatpush1.xpose.msra.mxu0 0.0
    %1756 = vmatprep.subr.mxu0 0.0
    %1757 = vmatpush1.xpose.msra.mxu0 0.0
    %1758 = vmatprep.subr.mxu0 0.0
    %1759 = vmatpush1.xpose.msra.mxu0 0.0
    %1760 = vmatprep.subr.mxu0 0.0
    %1761 = vmatpush1.xpose.msra.mxu0 0.0
    %1762 = vmatprep.subr.mxu0 0.0
    %1763 = vmatpush1.xpose.msra.mxu0 0.0
    %1764 = vmatprep.subr.mxu0 0.0
    %1765 = vmatpush1.xpose.msra.mxu0 0.0
    %1766 = vmatprep.subr.mxu0 0.0
    %1767 = vmatpush1.xpose.msra.mxu0 0.0
    %1768 = vmatprep.subr.mxu0 0.0
    %1769 = vmatpush1.xpose.msra.mxu0 0.0
    %1770 = vmatprep.subr.mxu0 0.0
    %1771 = vmatpush1.xpose.msra.mxu0 0.0
    %1772 = vmatprep.subr.mxu0 0.0
    %1773 = vmatpush1.xpose.msra.mxu0 0.0
    %1774 = vmatprep.subr.mxu0 0.0
    %1775 = vmatpush1.xpose.msra.mxu0 0.0
    %1776 = vmatprep.subr.mxu0 0.0
    %1777 = vmatpush1.xpose.msra.mxu0 0.0
    %1778 = vmatprep.subr.mxu0 0.0
    %1779 = vmatpush1.xpose.msra.mxu0 0.0
    %1780 = vmatprep.subr.mxu0 0.0
    %1781 = vmatpush1.xpose.msra.mxu0 0.0
    %1782 = vmatprep.subr.mxu0 0.0
    %1783 = vmatpush1.xpose.msra.mxu0 0.0
    %1784 = vmatprep.subr.mxu0 0.0
    %1785 = vmatpush1.xpose.msra.mxu0 0.0
    %1786 = vmatprep.subr.mxu0 0.0
    %1787 = vmatpush1.xpose.msra.mxu0 0.0
    %1788 = vmatprep.subr.mxu0 0.0
    %1789 = vmatpush1.xpose.msra.mxu0 0.0
    %1790 = vmatprep.subr.mxu0 0.0
    %1791 = vmatpush1.xpose.msra.mxu0 0.0
    %1792 = vmatprep.subr.mxu0 0.0
    %1793 = vmatpush1.xpose.msra.mxu0 0.0
    %1794 = vmatprep.subr.mxu0 0.0
    %1795 = vmatpush1.xpose.msra.mxu0 0.0
    %1796 = vmatprep.subr.mxu0 0.0
    %1797 = vmatpush1.xpose.msra.mxu0 0.0
    %1798 = vmatprep.subr.mxu0 0.0
    %1799 = vmatpush1.xpose.msra.mxu0 0.0
    %1800 = vmatprep.subr.mxu0 0.0
    %1801 = vmatpush1.xpose.msra.mxu0 0.0
    %1802 = vmatprep.mubr.f32.mxu0 0.0
    %1803 = vmatmul.mubr.f32.gmra.mrb[0].mxu0 %v1736
    %v1804 = vpop.f32.mrb[0].mxu0
    %v1805 = vadd.f32 0.0, %v1804
    %v1806 = vpop.f32.mrb[0].mxu0
    %1807 = vdwg.mxu0
    %v1808 = vlaneseq
    %v1809 = vshrl.u32 %v1808, 7
    %vm1810 = vcmp.eq.s32.totalorder %v1809, %v49
    %v1811 = vsel %vm1810, 1, 0
    %v1812 = vcvt.s32.f32 %v1811
    %v1813 = vsub.f32 %v1805, %v1812
    %v1814 = vrcp.pop 0.5
    %v1815 = vmul.f32 %v1813, %v1814
    %vm1816 = vcmask 64512
    %v1817 = vsel %vm1816, %v1815, -inf
    %1818 = vmax.xlane.f32.xlu0 %v1817
    %v1819 = vpop.xlane.xlu0 %1818
    %v1820 = vsub.f32 %v1815, %v1819
    %v1821 = vmul.f32 %v1820, 1.442695
    %v1822 = vpow.pop %v1821
    %v1823 = vsel %vm1816, %v1822, 0.0
    %1824 = vadd.xlane.f32.xlu0 %v1823
    %v1825 = vpop.xlane.xlu0 %1824
    %v1826 = vlog2.pop %v1825
    %v1827 = vmul.f32 %v1826, 0.6931472
    %v1828 = vadd.f32 %v1819, %v1827
    %v1829 = vsub.f32 %v1815, %v1828
    %v1830 = vadd.s32 %v1809, 1
    %vm1831 = vcmp.lt.s32.totalorder %v1809, 0
    %v1832 = vsub.s32 0, %v1809
    %v1833 = vsel %vm1831, %v1832, %v1809
    %v1834 = vshrl.u32 %v1833, 1
    %v1835 = vand.u32 %v1833, 1
    %v1836 = vsub.s32 0, %v1835
    %v1837 = vsel %vm1831, %v1836, %v1835
    %vm1838 = vcmp.ne.s32.totalorder %v1837, 0
    %vm1839 = vcmp.lt.s32.totalorder %v1837, 0
    %vm1840 = vmand %vm1839, %vm1838
    %v1841 = vadd.s32 %v1837, 2
    %v1842 = vsel %vm1840, %v1841, %v1837
    %v1843 = vmul.u32 %v1842, 2
    %v1844 = vsub.s32 %v1830, %v1843
    %vm1845 = vcmp.eq.s32.totalorder %v49, %v1844
    %v1846 = vsel %vm1845, 1, 0
    %v1847 = vcvt.s32.f32 %v1846
    %v1848 = vmul.f32 %v1847, %v1829
    %v1849 = vsel %vm1816, %v1848, 0.0
    %1850 = vadd.xlane.f32.xlu0 %v1849
    %v1851 = vpop.xlane.xlu0 %1850
    %v1852 = vrot.slane %v1851, 4
    %v1853 = vadd.f32 %v1851, %v1852
    %v1854 = vrot.slane %v1853, 2
    %v1855 = vadd.f32 %v1853, %v1854
    %v1856 = vrot.slane %v1855, 1
    %v1857 = vadd.f32 %v1855, %v1856
    %v1858 = vsub.f32 0.0, %v1857
    %v1859 = vrcp.pop 8.0
    %v1860 = vmul.f32 %v1858, %v1859
    %vm1861 = vcmask 0
    %1862 = vst.msk [vmem:[#allocation2] sm:$0x1] %vm1861, %v1860
    // Predicated region
    $region18: #{path_encoder_forward.1} parent=1 // pred_check
      _
    $region19: #{path_encoder_forward.1} parent=1 // pred_check_branch
      %1864 = sbr.rel (0) target = $region21
    $region20: #{path_encoder_forward.1} parent=1 // pred_region
      %s1866 = ssub.s32 16, 16
      %1867 = vsyncadd [#allocation3], %s1866
      %s1869 = sshll.u32 [#allocation2], 4
      %s1870 = int_to_ptr.vmem [resolvable:$true] %s1869
      %1872 = dma.vmem_to_hbm [thread:$0]  %s1870, 16, %s4, [#allocation3]
    $region21: #{path_encoder_forward.1} parent=1 // pred_fallthru
      _
    // Predicated region
    $region22: #{path_encoder_forward.1} parent=1 // pred_check
      _
    $region23: #{path_encoder_forward.1} parent=1 // pred_check_branch
      %1874 = sbr.rel (0) target = $region25
    $region24: #{path_encoder_forward.1} parent=1 // pred_region
      %s1876 = ssub.s32 128, 128
      %1877 = vsyncadd [#allocation5], %s1876
      %s1879 = sshll.u32 [#allocation4], 4
      %s1880 = int_to_ptr.vmem [resolvable:$true] %s1879
      %1882 = dma.vmem_to_hbm [thread:$0]  %s1880, 128, %s5, [#allocation5]
    $region25: #{path_encoder_forward.1} parent=1 // pred_fallthru
      _
    // Predicated region
    $region26: #{path_encoder_forward.1} parent=1 // pred_check
      _
    $region27: #{path_encoder_forward.1} parent=1 // pred_check_branch
      %1884 = sbr.rel (0) target = $region29
    $region28: #{path_encoder_forward.1} parent=1 // pred_region
      %1885 = dma.done [#allocation3], 16
    $region29: #{path_encoder_forward.1} parent=1 // pred_fallthru
      _
    // Predicated region
    $region30: #{path_encoder_forward.1} parent=1 // pred_check
      _
    $region31: #{path_encoder_forward.1} parent=1 // pred_check_branch
      %1887 = sbr.rel (0) target = $region33
    $region32: #{path_encoder_forward.1} parent=1 // pred_region
      %1888 = dma.done [#allocation5], 128
    $region33: #{path_encoder_forward.1} parent=1 // pred_fallthru
      _
    %1889 = vsyncpa [#allocation3], 1
    %1890 = vsyncpa [#allocation5], 1

</llo_original>
